<compile_context>
chip_gen: v6e
topology: v6e:2x2x1
jax: 0.10.0
libtpu: 0.0.40
codegen_flags: <defaults>
</compile_context>

<pallas_src>
import functools

import jax
import jax.numpy as jnp
from jax.experimental import pallas as pl
from jax.experimental.pallas import tpu as pltpu

_EPS = 1e-5


# ---------------------------------------------------------------------------
# In-kernel conv helper: 3x3 "same" conv on a flat (C, H*W) layout.
# slab_ref holds [zeros(W+1) | x_flat | zeros(W+1)] along the lane axis, so a
# tap offset s = ky*W + kx is just a static lane-shifted window.  Row overflow
# lands in the zero pads; column wrap is removed with static masks.
# ---------------------------------------------------------------------------
def _conv3x3_flat(slab_ref, w_ref, scale, bias, *, H, W):
    HW = H * W
    pad = W + 1
    c_in = slab_ref.shape[0]
    c_out = w_ref.shape[1]

    col = jax.lax.broadcasted_iota(jnp.int32, (c_in, HW), 1) % W
    not_left_edge = col > 0          # valid source column for kx = -1
    not_right_edge = col < (W - 1)   # valid source column for kx = +1

    acc = jnp.zeros((c_out, HW), jnp.float32)
    t = 0
    for ky in (-1, 0, 1):
        for kx in (-1, 0, 1):
            start = pad + ky * W + kx
            tap = slab_ref[:, start:start + HW]          # (C, HW) bf16
            if kx == -1:
                tap = jnp.where(not_left_edge, tap, 0)
            elif kx == 1:
                tap = jnp.where(not_right_edge, tap, 0)
            # (Cout, Cin) @ (Cin, HW): MXU N-dim = HW (lane dense).
            acc = acc + jnp.dot(w_ref[t], tap,
                                preferred_element_type=jnp.float32)
            t += 1
    return acc * scale + bias                            # folded BN (f32)


def _fill_slab(slab_ref, interior, *, H, W):
    """Zero the halo strips and write the interior of a flat slab."""
    HW = H * W
    pad = W + 1
    c = slab_ref.shape[0]
    slab_ref[:, :pad] = jnp.zeros((c, pad), slab_ref.dtype)
    slab_ref[:, pad + HW:] = jnp.zeros((c, pad), slab_ref.dtype)
    slab_ref[:, pad:pad + HW] = interior.astype(slab_ref.dtype)


# ---------------------------------------------------------------------------
# Fused residual-block kernels (channel-major, one batch element per step)
# ---------------------------------------------------------------------------
def _resblock_id_kernel(x_ref, w1_ref, s1_ref, b1_ref, w2_ref, s2_ref, b2_ref,
                        o_ref, xslab, hslab, *, H, W):
    c_out = o_ref.shape[1]
    x = x_ref[0]                                         # (Cin, HW) bf16
    _fill_slab(xslab, x, H=H, W=W)

    # conv1 + bn1 + relu  (intermediate stays in VMEM, bf16)
    h = jnp.maximum(
        _conv3x3_flat(xslab, w1_ref, s1_ref[...], b1_ref[...], H=H, W=W), 0.0)
    _fill_slab(hslab, h, H=H, W=W)

    # conv2 + bn2
    y = _conv3x3_flat(hslab, w2_ref, s2_ref[...], b2_ref[...], H=H, W=W)

    # identity shortcut + relu
    y = jnp.maximum(y + x[:c_out].astype(jnp.float32), 0.0)
    o_ref[0] = y.astype(o_ref.dtype)


def _resblock_proj_kernel(x_ref, w1_ref, s1_ref, b1_ref, w2_ref, s2_ref,
                          b2_ref, ws_ref, ss_ref, bs_ref,
                          o_ref, xslab, hslab, *, H, W):
    x = x_ref[0]                                         # (Cin_p, HW) bf16
    _fill_slab(xslab, x, H=H, W=W)

    h = jnp.maximum(
        _conv3x3_flat(xslab, w1_ref, s1_ref[...], b1_ref[...], H=H, W=W), 0.0)
    _fill_slab(hslab, h, H=H, W=W)

    y = _conv3x3_flat(hslab, w2_ref, s2_ref[...], b2_ref[...], H=H, W=W)

    # projected shortcut: 1x1 conv + folded BN (also lane-dense, N = HW)
    sc = jnp.dot(ws_ref[...], x, preferred_element_type=jnp.float32)
    sc = sc * ss_ref[...] + bs_ref[...]

    y = jnp.maximum(y + sc, 0.0)
    o_ref[0] = y.astype(o_ref.dtype)


# ---------------------------------------------------------------------------
# Wrapper-side parameter plumbing
# ---------------------------------------------------------------------------
def _fold_bn(gamma, beta, mean, var):
    scale = gamma / jnp.sqrt(var + _EPS)
    bias = beta - mean * scale
    return (scale.reshape(-1, 1).astype(jnp.float32),
            bias.reshape(-1, 1).astype(jnp.float32))


def _w3x3_to_taps(w_oihw, cin_pad):
    # (Cout, Cin, 3, 3) -> (9, Cout, Cin_pad); tap index t = dy*3 + dx matches
    # the (ky, kx) loop order in _conv3x3_flat.
    cout, cin = w_oihw.shape[0], w_oihw.shape[1]
    w = jnp.transpose(w_oihw, (2, 3, 0, 1)).reshape(9, cout, cin)
    if cin_pad > cin:
        w = jnp.pad(w, ((0, 0), (0, 0), (0, cin_pad - cin)))
    return w.astype(jnp.bfloat16)


def _const_spec(a):
    # weights / folded-BN params: constant index_map -> VMEM-resident across grid
    nd = a.ndim
    return pl.BlockSpec(a.shape, lambda n, _nd=nd: (0,) * _nd)


# ---------------------------------------------------------------------------
# Full ResidualBlock forward. x is NCHW (like the PyTorch module).
# ---------------------------------------------------------------------------
def residual_block(x_nchw, params, stride=1):
    if stride != 1:
        # TODO(synk): strided (downsampling) path not implemented.
        raise NotImplementedError("residual_block: only stride=1 is supported")

    N, Cin, H, W = x_nchw.shape
    Cout = params["w1"].shape[0]
    HW = H * W

    # Pad input channels up to a multiple of 8 (sublane / MXU-K alignment);
    # padded channels are zero and paired with zero weight columns.
    Cin_p = -(-Cin // 8) * 8
    x = x_nchw.reshape(N, Cin, HW)
    if Cin_p != Cin:
        x = jnp.pad(x, ((0, 0), (0, Cin_p - Cin), (0, 0)))
    x = x.astype(jnp.bfloat16)

    w1 = _w3x3_to_taps(params["w1"], Cin_p)          # (9, Cout, Cin_p)
    w2 = _w3x3_to_taps(params["w2"], Cout)           # (9, Cout, Cout)
    s1, b1 = _fold_bn(*params["bn1"])                # (Cout, 1) f32
    s2, b2 = _fold_bn(*params["bn2"])

    args = [x, w1, s1, b1, w2, s2, b2]
    in_specs = [pl.BlockSpec((1, Cin_p, HW), lambda n: (n, 0, 0))]
    in_specs += [_const_spec(a) for a in args[1:]]

    projected = (stride != 1) or (Cin != Cout)
    if projected:
        ws = params["ws"][:, :, 0, 0]                # (Cout, Cin)
        if Cin_p != Cin:
            ws = jnp.pad(ws, ((0, 0), (0, Cin_p - Cin)))
        ws = ws.astype(jnp.bfloat16)
        ss, bs = _fold_bn(*params["bns"])
        args += [ws, ss, bs]
        in_specs += [_const_spec(ws), _const_spec(ss), _const_spec(bs)]
        kernel = functools.partial(_resblock_proj_kernel, H=H, W=W)
    else:
        kernel = functools.partial(_resblock_id_kernel, H=H, W=W)

    slab_w = HW + 2 * (W + 1)
    out = pl.pallas_call(
        kernel,
        grid=(N,),                                   # pipelined over batch
        out_shape=jax.ShapeDtypeStruct((N, Cout, HW), jnp.bfloat16),
        in_specs=in_specs,
        out_specs=pl.BlockSpec((1, Cout, HW), lambda n: (n, 0, 0)),
        scratch_shapes=[
            pltpu.VMEM((Cin_p, slab_w), jnp.bfloat16),   # zero-extended input
            pltpu.VMEM((Cout, slab_w), jnp.bfloat16),    # zero-extended interm.
        ],
        compiler_params=pltpu.CompilerParams(
            dimension_semantics=("parallel",),       # both TCs on multi-core chips
        ),
    )(*args)

    return out.reshape(N, Cout, H, W)                # free: NCHW-flat -> NCHW


# ---------------------------------------------------------------------------
# Pure-JAX reference with the same bf16-input / f32-accumulate numerics
# ---------------------------------------------------------------------------
def _ref_block(x_nchw, params, stride=1):
    def bn(y, p):
        g, b, m, v = p
        return (y - m) / jnp.sqrt(v + _EPS) * g + b

    def conv(y_nhwc, w_oihw, s):
        w_hwio = jnp.transpose(w_oihw, (2, 3, 1, 0)).astype(jnp.bfloat16)
        pad = (w_oihw.shape[2] - 1) // 2
        return jax.lax.conv_general_dilated(
            y_nhwc.astype(jnp.bfloat16), w_hwio, (s, s),
            padding=[(pad, pad), (pad, pad)],
            dimension_numbers=("NHWC", "HWIO", "NHWC"),
            preferred_element_type=jnp.float32)

    x = jnp.transpose(x_nchw, (0, 2, 3, 1)).astype(jnp.float32)
    h = jax.nn.relu(bn(conv(x, params["w1"], stride), params["bn1"]))
    y = bn(conv(h, params["w2"], 1), params["bn2"])
    Cout, Cin = params["w1"].shape[0], params["w1"].shape[1]
    if stride != 1 or Cin != Cout:
        sc = bn(conv(x, params["ws"], stride), params["bns"])
    else:
        sc = x.astype(jnp.bfloat16).astype(jnp.float32)  # mirror bf16 boundary
    return jnp.transpose(jax.nn.relu(y + sc), (0, 3, 1, 2))


# ---------------------------------------------------------------------------
def _init_params(key, cin, cout, projected):
    ks = jax.random.split(key, 8)

    def bn_params(k, c):
        k1, k2, k3, k4 = jax.random.split(k, 4)
        gamma = 1.0 + 0.1 * jax.random.normal(k1, (c,), jnp.float32)
        beta = 0.1 * jax.random.normal(k2, (c,), jnp.float32)
        mean = 0.1 * jax.random.normal(k3, (c,), jnp.float32)
        var = jax.random.uniform(k4, (c,), jnp.float32, 0.5, 1.5)
        return (gamma, beta, mean, var)

    p = {
        "w1": 0.1 * jax.random.normal(ks[0], (cout, cin, 3, 3), jnp.float32),
        "bn1": bn_params(ks[1], cout),
        "w2": 0.1 * jax.random.normal(ks[2], (cout, cout, 3, 3), jnp.float32),
        "bn2": bn_params(ks[3], cout),
    }
    if projected:
        p["ws"] = 0.1 * jax.random.normal(ks[4], (cout, cin, 1, 1), jnp.float32)
        p["bns"] = bn_params(ks[5], cout)
    return p


if __name__ == "__main__":
    key = jax.random.PRNGKey(0)
    kx, kp1, kp2 = jax.random.split(key, 3)

    # Case 1: in_channels != out_channels -> projected (1x1 conv + BN) shortcut
    N, Cin, Cout, H, W = 2, 4, 8, 16, 16
    x = jax.random.normal(kx, (N, Cin, H, W), jnp.float32)
    params1 = _init_params(kp1, Cin, Cout, projected=True)
    out1 = residual_block(x, params1, stride=1)
    jax.block_until_ready(out1)
    ref1 = _ref_block(x, params1, stride=1)
    assert out1.shape == ref1.shape
    assert jnp.allclose(out1.astype(jnp.float32), ref1, atol=2e-2, rtol=2e-2), \
        "projected-shortcut mismatch"

    # Case 2: in_channels == out_channels, stride=1 -> identity shortcut
    params2 = _init_params(kp2, Cout, Cout, projected=False)
    out2 = residual_block(out1, params2, stride=1)
    jax.block_until_ready(out2)
    ref2 = _ref_block(out1, params2, stride=1)
    assert jnp.allclose(out2.astype(jnp.float32), ref2, atol=2e-2, rtol=2e-2), \
        "identity-shortcut mismatch"

    print("KERNEL_OK")
</pallas_src>

<mosaic_0001>
module attributes {stable_mosaic.version = 11 : i64} {
  func.func @_resblock_proj_kernel(%arg0: i32, %arg1: memref<1x8x256xbf16, #tpu.memory_space<vmem>>, %arg2: memref<9x8x8xbf16, #tpu.memory_space<vmem>>, %arg3: memref<8x1xf32, #tpu.memory_space<vmem>>, %arg4: memref<8x1xf32, #tpu.memory_space<vmem>>, %arg5: memref<9x8x8xbf16, #tpu.memory_space<vmem>>, %arg6: memref<8x1xf32, #tpu.memory_space<vmem>>, %arg7: memref<8x1xf32, #tpu.memory_space<vmem>>, %arg8: memref<8x8xbf16, #tpu.memory_space<vmem>>, %arg9: memref<8x1xf32, #tpu.memory_space<vmem>>, %arg10: memref<8x1xf32, #tpu.memory_space<vmem>>, %arg11: memref<1x8x256xbf16, #tpu.memory_space<vmem>>, %arg12: memref<8x290xbf16, #tpu.memory_space<vmem>>, %arg13: memref<8x290xbf16, #tpu.memory_space<vmem>>) attributes {dimension_semantics = [#tpu.dimension_semantics<parallel>], iteration_bounds = array<i64: 2>, scalar_prefetch = 0 : i64, scratch_operands = 2 : i64, tpu.core_type = #tpu.core_type<tc>, window_params = [{transform_indices = @transform_0, window_bounds = array<i64: 1, 8, 256>}, {pipeline_mode = #tpu.pipeline_mode<synchronous>, transform_indices = @transform_1, window_bounds = array<i64: 9, 8, 8>}, {pipeline_mode = #tpu.pipeline_mode<synchronous>, transform_indices = @transform_2, window_bounds = array<i64: 8, 1>}, {pipeline_mode = #tpu.pipeline_mode<synchronous>, transform_indices = @transform_3, window_bounds = array<i64: 8, 1>}, {pipeline_mode = #tpu.pipeline_mode<synchronous>, transform_indices = @transform_4, window_bounds = array<i64: 9, 8, 8>}, {pipeline_mode = #tpu.pipeline_mode<synchronous>, transform_indices = @transform_5, window_bounds = array<i64: 8, 1>}, {pipeline_mode = #tpu.pipeline_mode<synchronous>, transform_indices = @transform_6, window_bounds = array<i64: 8, 1>}, {pipeline_mode = #tpu.pipeline_mode<synchronous>, transform_indices = @transform_7, window_bounds = array<i64: 8, 8>}, {pipeline_mode = #tpu.pipeline_mode<synchronous>, transform_indices = @transform_8, window_bounds = array<i64: 8, 1>}, {pipeline_mode = #tpu.pipeline_mode<synchronous>, transform_indices = @transform_9, window_bounds = array<i64: 8, 1>}, {transform_indices = @transform_10, window_bounds = array<i64: 1, 8, 256>}]} {
    %c0 = arith.constant 0 : index
    %c0_0 = arith.constant 0 : index
    %c0_1 = arith.constant 0 : index
    %0 = vector.load %arg1[%c0, %c0_0, %c0_1] : memref<1x8x256xbf16, #tpu.memory_space<vmem>>, vector<1x8x256xbf16>
    %1 = vector.shape_cast %0 : vector<1x8x256xbf16> to vector<8x256xbf16>
    %cst = arith.constant 0.000000e+00 : bf16
    %2 = vector.broadcast %cst : bf16 to vector<8x17xbf16>
    %c0_2 = arith.constant 0 : index
    %c0_3 = arith.constant 0 : index
    %3 = vector.load %arg12[%c0_2, %c0_3] : memref<8x290xbf16, #tpu.memory_space<vmem>>, vector<8x17xbf16>
    tpu.vector_store %arg12[%c0_2, %c0_3], %2 {strides = array<i32>} : memref<8x290xbf16, #tpu.memory_space<vmem>>, vector<8x17xbf16>,
    %cst_4 = arith.constant 0.000000e+00 : bf16
    %4 = vector.broadcast %cst_4 : bf16 to vector<8x17xbf16>
    %c0_5 = arith.constant 0 : index
    %c273 = arith.constant 273 : index
    %5 = vector.load %arg12[%c0_5, %c273] : memref<8x290xbf16, #tpu.memory_space<vmem>>, vector<8x17xbf16>
    tpu.vector_store %arg12[%c0_5, %c273], %4 {strides = array<i32>} : memref<8x290xbf16, #tpu.memory_space<vmem>>, vector<8x17xbf16>,
    %c0_6 = arith.constant 0 : index
    %c17 = arith.constant 17 : index
    %6 = vector.load %arg12[%c0_6, %c17] : memref<8x290xbf16, #tpu.memory_space<vmem>>, vector<8x256xbf16>
    tpu.vector_store %arg12[%c0_6, %c17], %1 {strides = array<i32>} : memref<8x290xbf16, #tpu.memory_space<vmem>>, vector<8x256xbf16>,
    %c0_7 = arith.constant 0 : index
    %c0_8 = arith.constant 0 : index
    %7 = vector.load %arg3[%c0_7, %c0_8] : memref<8x1xf32, #tpu.memory_space<vmem>>, vector<8x1xf32>
    %c0_9 = arith.constant 0 : index
    %c0_10 = arith.constant 0 : index
    %8 = vector.load %arg4[%c0_9, %c0_10] : memref<8x1xf32, #tpu.memory_space<vmem>>, vector<8x1xf32>
    %9 = tpu.iota {dimensions = array<i32: 1>} : vector<8x256xi32>
    %c16_i32 = arith.constant 16 : i32
    %c0_i32 = arith.constant 0 : i32
    %10 = arith.cmpi eq, %c16_i32, %c0_i32 : i32
    %c1_i32 = arith.constant 1 : i32
    %11 = arith.select %10, %c1_i32, %c16_i32 : i32
    %12 = vector.broadcast %11 : i32 to vector<8x256xi32>
    %13 = arith.remsi %9, %12 : vector<8x256xi32>
    %c0_i32_11 = arith.constant 0 : i32
    %14 = vector.broadcast %c0_i32_11 : i32 to vector<8x256xi32>
    %15 = arith.cmpi ne, %13, %14 : vector<8x256xi32>
    %c0_i32_12 = arith.constant 0 : i32
    %16 = vector.broadcast %c0_i32_12 : i32 to vector<8x256xi32>
    %17 = arith.cmpi slt, %13, %16 : vector<8x256xi32>
    %c0_i32_13 = arith.constant 0 : i32
    %18 = arith.cmpi slt, %11, %c0_i32_13 : i32
    %19 = vector.broadcast %18 : i1 to vector<8x256xi1>
    %20 = vector.broadcast %19 : vector<8x256xi1> to vector<8x256xi1>
    %21 = arith.xori %17, %20 : vector<8x256xi1>
    %22 = arith.andi %21, %15 : vector<8x256xi1>
    %23 = vector.broadcast %11 : i32 to vector<8x256xi32>
    %24 = arith.addi %13, %23 : vector<8x256xi32>
    %25 = arith.select %22, %24, %13 : vector<8x256xi1>, vector<8x256xi32>
    %c0_i32_14 = arith.constant 0 : i32
    %26 = vector.broadcast %c0_i32_14 : i32 to vector<8x256xi32>
    %27 = arith.cmpi sgt, %25, %26 : vector<8x256xi32>
    %c15_i32 = arith.constant 15 : i32
    %28 = vector.broadcast %c15_i32 : i32 to vector<8x256xi32>
    %29 = arith.cmpi slt, %25, %28 : vector<8x256xi32>
    %cst_15 = arith.constant 0.000000e+00 : f32
    %30 = vector.broadcast %cst_15 : f32 to vector<8x256xf32>
    %c0_16 = arith.constant 0 : index
    %c0_17 = arith.constant 0 : index
    %31 = vector.load %arg12[%c0_16, %c0_17] : memref<8x290xbf16, #tpu.memory_space<vmem>>, vector<8x256xbf16>
    %c0_i32_18 = arith.constant 0 : i32
    %32 = arith.sitofp %c0_i32_18 : i32 to bf16
    %33 = vector.broadcast %32 : bf16 to vector<8x256xbf16>
    %34 = arith.select %27, %31, %33 : vector<8x256xi1>, vector<8x256xbf16>
    %c0_19 = arith.constant 0 : index
    %c0_20 = arith.constant 0 : index
    %c0_21 = arith.constant 0 : index
    %35 = vector.load %arg2[%c0_19, %c0_20, %c0_21] : memref<9x8x8xbf16, #tpu.memory_space<vmem>>, vector<1x8x8xbf16>
    %36 = vector.shape_cast %35 : vector<1x8x8xbf16> to vector<8x8xbf16>
    %cst_22 = arith.constant dense<0.000000e+00> : vector<8x256xf32>
    %37 = tpu.matmul %36, %34, %cst_22 {dimension_numbers = #tpu.dot_dimension_numbers<[1], [0], [0], [1], [0, 0, 1, 1], [], []>} : vector<8x8xbf16>, vector<8x256xbf16>, vector<8x256xf32> -> vector<8x256xf32>
    %38 = arith.addf %30, %37 : vector<8x256xf32>
    %c0_23 = arith.constant 0 : index
    %c1 = arith.constant 1 : index
    %39 = vector.load %arg12[%c0_23, %c1] : memref<8x290xbf16, #tpu.memory_space<vmem>>, vector<8x256xbf16>
    %c1_24 = arith.constant 1 : index
    %c0_25 = arith.constant 0 : index
    %c0_26 = arith.constant 0 : index
    %40 = vector.load %arg2[%c1_24, %c0_25, %c0_26] : memref<9x8x8xbf16, #tpu.memory_space<vmem>>, vector<1x8x8xbf16>
    %41 = vector.shape_cast %40 : vector<1x8x8xbf16> to vector<8x8xbf16>
    %cst_27 = arith.constant dense<0.000000e+00> : vector<8x256xf32>
    %42 = tpu.matmul %41, %39, %cst_27 {dimension_numbers = #tpu.dot_dimension_numbers<[1], [0], [0], [1], [0, 0, 1, 1], [], []>} : vector<8x8xbf16>, vector<8x256xbf16>, vector<8x256xf32> -> vector<8x256xf32>
    %43 = arith.addf %38, %42 : vector<8x256xf32>
    %c0_28 = arith.constant 0 : index
    %c2 = arith.constant 2 : index
    %44 = vector.load %arg12[%c0_28, %c2] : memref<8x290xbf16, #tpu.memory_space<vmem>>, vector<8x256xbf16>
    %c0_i32_29 = arith.constant 0 : i32
    %45 = arith.sitofp %c0_i32_29 : i32 to bf16
    %46 = vector.broadcast %45 : bf16 to vector<8x256xbf16>
    %47 = arith.select %29, %44, %46 : vector<8x256xi1>, vector<8x256xbf16>
    %c2_30 = arith.constant 2 : index
    %c0_31 = arith.constant 0 : index
    %c0_32 = arith.constant 0 : index
    %48 = vector.load %arg2[%c2_30, %c0_31, %c0_32] : memref<9x8x8xbf16, #tpu.memory_space<vmem>>, vector<1x8x8xbf16>
    %49 = vector.shape_cast %48 : vector<1x8x8xbf16> to vector<8x8xbf16>
    %cst_33 = arith.constant dense<0.000000e+00> : vector<8x256xf32>
    %50 = tpu.matmul %49, %47, %cst_33 {dimension_numbers = #tpu.dot_dimension_numbers<[1], [0], [0], [1], [0, 0, 1, 1], [], []>} : vector<8x8xbf16>, vector<8x256xbf16>, vector<8x256xf32> -> vector<8x256xf32>
    %51 = arith.addf %43, %50 : vector<8x256xf32>
    %c0_34 = arith.constant 0 : index
    %c16 = arith.constant 16 : index
    %52 = vector.load %arg12[%c0_34, %c16] : memref<8x290xbf16, #tpu.memory_space<vmem>>, vector<8x256xbf16>
    %c0_i32_35 = arith.constant 0 : i32
    %53 = arith.sitofp %c0_i32_35 : i32 to bf16
    %54 = vector.broadcast %53 : bf16 to vector<8x256xbf16>
    %55 = arith.select %27, %52, %54 : vector<8x256xi1>, vector<8x256xbf16>
    %c3 = arith.constant 3 : index
    %c0_36 = arith.constant 0 : index
    %c0_37 = arith.constant 0 : index
    %56 = vector.load %arg2[%c3, %c0_36, %c0_37] : memref<9x8x8xbf16, #tpu.memory_space<vmem>>, vector<1x8x8xbf16>
    %57 = vector.shape_cast %56 : vector<1x8x8xbf16> to vector<8x8xbf16>
    %cst_38 = arith.constant dense<0.000000e+00> : vector<8x256xf32>
    %58 = tpu.matmul %57, %55, %cst_38 {dimension_numbers = #tpu.dot_dimension_numbers<[1], [0], [0], [1], [0, 0, 1, 1], [], []>} : vector<8x8xbf16>, vector<8x256xbf16>, vector<8x256xf32> -> vector<8x256xf32>
    %59 = arith.addf %51, %58 : vector<8x256xf32>
    %c0_39 = arith.constant 0 : index
    %c17_40 = arith.constant 17 : index
    %60 = vector.load %arg12[%c0_39, %c17_40] : memref<8x290xbf16, #tpu.memory_space<vmem>>, vector<8x256xbf16>
    %c4 = arith.constant 4 : index
    %c0_41 = arith.constant 0 : index
    %c0_42 = arith.constant 0 : index
    %61 = vector.load %arg2[%c4, %c0_41, %c0_42] : memref<9x8x8xbf16, #tpu.memory_space<vmem>>, vector<1x8x8xbf16>
    %62 = vector.shape_cast %61 : vector<1x8x8xbf16> to vector<8x8xbf16>
    %cst_43 = arith.constant dense<0.000000e+00> : vector<8x256xf32>
    %63 = tpu.matmul %62, %60, %cst_43 {dimension_numbers = #tpu.dot_dimension_numbers<[1], [0], [0], [1], [0, 0, 1, 1], [], []>} : vector<8x8xbf16>, vector<8x256xbf16>, vector<8x256xf32> -> vector<8x256xf32>
    %64 = arith.addf %59, %63 : vector<8x256xf32>
    %c0_44 = arith.constant 0 : index
    %c18 = arith.constant 18 : index
    %65 = vector.load %arg12[%c0_44, %c18] : memref<8x290xbf16, #tpu.memory_space<vmem>>, vector<8x256xbf16>
    %c0_i32_45 = arith.constant 0 : i32
    %66 = arith.sitofp %c0_i32_45 : i32 to bf16
    %67 = vector.broadcast %66 : bf16 to vector<8x256xbf16>
    %68 = arith.select %29, %65, %67 : vector<8x256xi1>, vector<8x256xbf16>
    %c5 = arith.constant 5 : index
    %c0_46 = arith.constant 0 : index
    %c0_47 = arith.constant 0 : index
    %69 = vector.load %arg2[%c5, %c0_46, %c0_47] : memref<9x8x8xbf16, #tpu.memory_space<vmem>>, vector<1x8x8xbf16>
    %70 = vector.shape_cast %69 : vector<1x8x8xbf16> to vector<8x8xbf16>
    %cst_48 = arith.constant dense<0.000000e+00> : vector<8x256xf32>
    %71 = tpu.matmul %70, %68, %cst_48 {dimension_numbers = #tpu.dot_dimension_numbers<[1], [0], [0], [1], [0, 0, 1, 1], [], []>} : vector<8x8xbf16>, vector<8x256xbf16>, vector<8x256xf32> -> vector<8x256xf32>
    %72 = arith.addf %64, %71 : vector<8x256xf32>
    %c0_49 = arith.constant 0 : index
    %c32 = arith.constant 32 : index
    %73 = vector.load %arg12[%c0_49, %c32] : memref<8x290xbf16, #tpu.memory_space<vmem>>, vector<8x256xbf16>
    %c0_i32_50 = arith.constant 0 : i32
    %74 = arith.sitofp %c0_i32_50 : i32 to bf16
    %75 = vector.broadcast %74 : bf16 to vector<8x256xbf16>
    %76 = arith.select %27, %73, %75 : vector<8x256xi1>, vector<8x256xbf16>
    %c6 = arith.constant 6 : index
    %c0_51 = arith.constant 0 : index
    %c0_52 = arith.constant 0 : index
    %77 = vector.load %arg2[%c6, %c0_51, %c0_52] : memref<9x8x8xbf16, #tpu.memory_space<vmem>>, vector<1x8x8xbf16>
    %78 = vector.shape_cast %77 : vector<1x8x8xbf16> to vector<8x8xbf16>
    %cst_53 = arith.constant dense<0.000000e+00> : vector<8x256xf32>
    %79 = tpu.matmul %78, %76, %cst_53 {dimension_numbers = #tpu.dot_dimension_numbers<[1], [0], [0], [1], [0, 0, 1, 1], [], []>} : vector<8x8xbf16>, vector<8x256xbf16>, vector<8x256xf32> -> vector<8x256xf32>
    %80 = arith.addf %72, %79 : vector<8x256xf32>
    %c0_54 = arith.constant 0 : index
    %c33 = arith.constant 33 : index
    %81 = vector.load %arg12[%c0_54, %c33] : memref<8x290xbf16, #tpu.memory_space<vmem>>, vector<8x256xbf16>
    %c7 = arith.constant 7 : index
    %c0_55 = arith.constant 0 : index
    %c0_56 = arith.constant 0 : index
    %82 = vector.load %arg2[%c7, %c0_55, %c0_56] : memref<9x8x8xbf16, #tpu.memory_space<vmem>>, vector<1x8x8xbf16>
    %83 = vector.shape_cast %82 : vector<1x8x8xbf16> to vector<8x8xbf16>
    %cst_57 = arith.constant dense<0.000000e+00> : vector<8x256xf32>
    %84 = tpu.matmul %83, %81, %cst_57 {dimension_numbers = #tpu.dot_dimension_numbers<[1], [0], [0], [1], [0, 0, 1, 1], [], []>} : vector<8x8xbf16>, vector<8x256xbf16>, vector<8x256xf32> -> vector<8x256xf32>
    %85 = arith.addf %80, %84 : vector<8x256xf32>
    %c0_58 = arith.constant 0 : index
    %c34 = arith.constant 34 : index
    %86 = vector.load %arg12[%c0_58, %c34] : memref<8x290xbf16, #tpu.memory_space<vmem>>, vector<8x256xbf16>
    %c0_i32_59 = arith.constant 0 : i32
    %87 = arith.sitofp %c0_i32_59 : i32 to bf16
    %88 = vector.broadcast %87 : bf16 to vector<8x256xbf16>
    %89 = arith.select %29, %86, %88 : vector<8x256xi1>, vector<8x256xbf16>
    %c8 = arith.constant 8 : index
    %c0_60 = arith.constant 0 : index
    %c0_61 = arith.constant 0 : index
    %90 = vector.load %arg2[%c8, %c0_60, %c0_61] : memref<9x8x8xbf16, #tpu.memory_space<vmem>>, vector<1x8x8xbf16>
    %91 = vector.shape_cast %90 : vector<1x8x8xbf16> to vector<8x8xbf16>
    %cst_62 = arith.constant dense<0.000000e+00> : vector<8x256xf32>
    %92 = tpu.matmul %91, %89, %cst_62 {dimension_numbers = #tpu.dot_dimension_numbers<[1], [0], [0], [1], [0, 0, 1, 1], [], []>} : vector<8x8xbf16>, vector<8x256xbf16>, vector<8x256xf32> -> vector<8x256xf32>
    %93 = arith.addf %85, %92 : vector<8x256xf32>
    %94 = vector.broadcast %7 : vector<8x1xf32> to vector<8x256xf32>
    %95 = arith.mulf %93, %94 : vector<8x256xf32>
    %96 = vector.broadcast %8 : vector<8x1xf32> to vector<8x256xf32>
    %97 = arith.addf %95, %96 : vector<8x256xf32>
    %cst_63 = arith.constant 0.000000e+00 : f32
    %98 = vector.broadcast %cst_63 : f32 to vector<8x256xf32>
    %99 = arith.maximumf %97, %98 : vector<8x256xf32>
    %cst_64 = arith.constant 0.000000e+00 : bf16
    %100 = vector.broadcast %cst_64 : bf16 to vector<8x17xbf16>
    %c0_65 = arith.constant 0 : index
    %c0_66 = arith.constant 0 : index
    %101 = vector.load %arg13[%c0_65, %c0_66] : memref<8x290xbf16, #tpu.memory_space<vmem>>, vector<8x17xbf16>
    tpu.vector_store %arg13[%c0_65, %c0_66], %100 {strides = array<i32>} : memref<8x290xbf16, #tpu.memory_space<vmem>>, vector<8x17xbf16>,
    %cst_67 = arith.constant 0.000000e+00 : bf16
    %102 = vector.broadcast %cst_67 : bf16 to vector<8x17xbf16>
    %c0_68 = arith.constant 0 : index
    %c273_69 = arith.constant 273 : index
    %103 = vector.load %arg13[%c0_68, %c273_69] : memref<8x290xbf16, #tpu.memory_space<vmem>>, vector<8x17xbf16>
    tpu.vector_store %arg13[%c0_68, %c273_69], %102 {strides = array<i32>} : memref<8x290xbf16, #tpu.memory_space<vmem>>, vector<8x17xbf16>,
    %104 = arith.truncf %99 : vector<8x256xf32> to vector<8x256xbf16>
    %c0_70 = arith.constant 0 : index
    %c17_71 = arith.constant 17 : index
    %105 = vector.load %arg13[%c0_70, %c17_71] : memref<8x290xbf16, #tpu.memory_space<vmem>>, vector<8x256xbf16>
    tpu.vector_store %arg13[%c0_70, %c17_71], %104 {strides = array<i32>} : memref<8x290xbf16, #tpu.memory_space<vmem>>, vector<8x256xbf16>,
    %c0_72 = arith.constant 0 : index
    %c0_73 = arith.constant 0 : index
    %106 = vector.load %arg6[%c0_72, %c0_73] : memref<8x1xf32, #tpu.memory_space<vmem>>, vector<8x1xf32>
    %c0_74 = arith.constant 0 : index
    %c0_75 = arith.constant 0 : index
    %107 = vector.load %arg7[%c0_74, %c0_75] : memref<8x1xf32, #tpu.memory_space<vmem>>, vector<8x1xf32>
    %108 = tpu.iota {dimensions = array<i32: 1>} : vector<8x256xi32>
    %c16_i32_76 = arith.constant 16 : i32
    %c0_i32_77 = arith.constant 0 : i32
    %109 = arith.cmpi eq, %c16_i32_76, %c0_i32_77 : i32
    %c1_i32_78 = arith.constant 1 : i32
    %110 = arith.select %109, %c1_i32_78, %c16_i32_76 : i32
    %111 = vector.broadcast %110 : i32 to vector<8x256xi32>
    %112 = arith.remsi %108, %111 : vector<8x256xi32>
    %c0_i32_79 = arith.constant 0 : i32
    %113 = vector.broadcast %c0_i32_79 : i32 to vector<8x256xi32>
    %114 = arith.cmpi ne, %112, %113 : vector<8x256xi32>
    %c0_i32_80 = arith.constant 0 : i32
    %115 = vector.broadcast %c0_i32_80 : i32 to vector<8x256xi32>
    %116 = arith.cmpi slt, %112, %115 : vector<8x256xi32>
    %c0_i32_81 = arith.constant 0 : i32
    %117 = arith.cmpi slt, %110, %c0_i32_81 : i32
    %118 = vector.broadcast %117 : i1 to vector<8x256xi1>
    %119 = vector.broadcast %118 : vector<8x256xi1> to vector<8x256xi1>
    %120 = arith.xori %116, %119 : vector<8x256xi1>
    %121 = arith.andi %120, %114 : vector<8x256xi1>
    %122 = vector.broadcast %110 : i32 to vector<8x256xi32>
    %123 = arith.addi %112, %122 : vector<8x256xi32>
    %124 = arith.select %121, %123, %112 : vector<8x256xi1>, vector<8x256xi32>
    %c0_i32_82 = arith.constant 0 : i32
    %125 = vector.broadcast %c0_i32_82 : i32 to vector<8x256xi32>
    %126 = arith.cmpi sgt, %124, %125 : vector<8x256xi32>
    %c15_i32_83 = arith.constant 15 : i32
    %127 = vector.broadcast %c15_i32_83 : i32 to vector<8x256xi32>
    %128 = arith.cmpi slt, %124, %127 : vector<8x256xi32>
    %cst_84 = arith.constant 0.000000e+00 : f32
    %129 = vector.broadcast %cst_84 : f32 to vector<8x256xf32>
    %c0_85 = arith.constant 0 : index
    %c0_86 = arith.constant 0 : index
    %130 = vector.load %arg13[%c0_85, %c0_86] : memref<8x290xbf16, #tpu.memory_space<vmem>>, vector<8x256xbf16>
    %c0_i32_87 = arith.constant 0 : i32
    %131 = arith.sitofp %c0_i32_87 : i32 to bf16
    %132 = vector.broadcast %131 : bf16 to vector<8x256xbf16>
    %133 = arith.select %126, %130, %132 : vector<8x256xi1>, vector<8x256xbf16>
    %c0_88 = arith.constant 0 : index
    %c0_89 = arith.constant 0 : index
    %c0_90 = arith.constant 0 : index
    %134 = vector.load %arg5[%c0_88, %c0_89, %c0_90] : memref<9x8x8xbf16, #tpu.memory_space<vmem>>, vector<1x8x8xbf16>
    %135 = vector.shape_cast %134 : vector<1x8x8xbf16> to vector<8x8xbf16>
    %cst_91 = arith.constant dense<0.000000e+00> : vector<8x256xf32>
    %136 = tpu.matmul %135, %133, %cst_91 {dimension_numbers = #tpu.dot_dimension_numbers<[1], [0], [0], [1], [0, 0, 1, 1], [], []>} : vector<8x8xbf16>, vector<8x256xbf16>, vector<8x256xf32> -> vector<8x256xf32>
    %137 = arith.addf %129, %136 : vector<8x256xf32>
    %c0_92 = arith.constant 0 : index
    %c1_93 = arith.constant 1 : index
    %138 = vector.load %arg13[%c0_92, %c1_93] : memref<8x290xbf16, #tpu.memory_space<vmem>>, vector<8x256xbf16>
    %c1_94 = arith.constant 1 : index
    %c0_95 = arith.constant 0 : index
    %c0_96 = arith.constant 0 : index
    %139 = vector.load %arg5[%c1_94, %c0_95, %c0_96] : memref<9x8x8xbf16, #tpu.memory_space<vmem>>, vector<1x8x8xbf16>
    %140 = vector.shape_cast %139 : vector<1x8x8xbf16> to vector<8x8xbf16>
    %cst_97 = arith.constant dense<0.000000e+00> : vector<8x256xf32>
    %141 = tpu.matmul %140, %138, %cst_97 {dimension_numbers = #tpu.dot_dimension_numbers<[1], [0], [0], [1], [0, 0, 1, 1], [], []>} : vector<8x8xbf16>, vector<8x256xbf16>, vector<8x256xf32> -> vector<8x256xf32>
    %142 = arith.addf %137, %141 : vector<8x256xf32>
    %c0_98 = arith.constant 0 : index
    %c2_99 = arith.constant 2 : index
    %143 = vector.load %arg13[%c0_98, %c2_99] : memref<8x290xbf16, #tpu.memory_space<vmem>>, vector<8x256xbf16>
    %c0_i32_100 = arith.constant 0 : i32
    %144 = arith.sitofp %c0_i32_100 : i32 to bf16
    %145 = vector.broadcast %144 : bf16 to vector<8x256xbf16>
    %146 = arith.select %128, %143, %145 : vector<8x256xi1>, vector<8x256xbf16>
    %c2_101 = arith.constant 2 : index
    %c0_102 = arith.constant 0 : index
    %c0_103 = arith.constant 0 : index
    %147 = vector.load %arg5[%c2_101, %c0_102, %c0_103] : memref<9x8x8xbf16, #tpu.memory_space<vmem>>, vector<1x8x8xbf16>
    %148 = vector.shape_cast %147 : vector<1x8x8xbf16> to vector<8x8xbf16>
    %cst_104 = arith.constant dense<0.000000e+00> : vector<8x256xf32>
    %149 = tpu.matmul %148, %146, %cst_104 {dimension_numbers = #tpu.dot_dimension_numbers<[1], [0], [0], [1], [0, 0, 1, 1], [], []>} : vector<8x8xbf16>, vector<8x256xbf16>, vector<8x256xf32> -> vector<8x256xf32>
    %150 = arith.addf %142, %149 : vector<8x256xf32>
    %c0_105 = arith.constant 0 : index
    %c16_106 = arith.constant 16 : index
    %151 = vector.load %arg13[%c0_105, %c16_106] : memref<8x290xbf16, #tpu.memory_space<vmem>>, vector<8x256xbf16>
    %c0_i32_107 = arith.constant 0 : i32
    %152 = arith.sitofp %c0_i32_107 : i32 to bf16
    %153 = vector.broadcast %152 : bf16 to vector<8x256xbf16>
    %154 = arith.select %126, %151, %153 : vector<8x256xi1>, vector<8x256xbf16>
    %c3_108 = arith.constant 3 : index
    %c0_109 = arith.constant 0 : index
    %c0_110 = arith.constant 0 : index
    %155 = vector.load %arg5[%c3_108, %c0_109, %c0_110] : memref<9x8x8xbf16, #tpu.memory_space<vmem>>, vector<1x8x8xbf16>
    %156 = vector.shape_cast %155 : vector<1x8x8xbf16> to vector<8x8xbf16>
    %cst_111 = arith.constant dense<0.000000e+00> : vector<8x256xf32>
    %157 = tpu.matmul %156, %154, %cst_111 {dimension_numbers = #tpu.dot_dimension_numbers<[1], [0], [0], [1], [0, 0, 1, 1], [], []>} : vector<8x8xbf16>, vector<8x256xbf16>, vector<8x256xf32> -> vector<8x256xf32>
    %158 = arith.addf %150, %157 : vector<8x256xf32>
    %c0_112 = arith.constant 0 : index
    %c17_113 = arith.constant 17 : index
    %159 = vector.load %arg13[%c0_112, %c17_113] : memref<8x290xbf16, #tpu.memory_space<vmem>>, vector<8x256xbf16>
    %c4_114 = arith.constant 4 : index
    %c0_115 = arith.constant 0 : index
    %c0_116 = arith.constant 0 : index
    %160 = vector.load %arg5[%c4_114, %c0_115, %c0_116] : memref<9x8x8xbf16, #tpu.memory_space<vmem>>, vector<1x8x8xbf16>
    %161 = vector.shape_cast %160 : vector<1x8x8xbf16> to vector<8x8xbf16>
    %cst_117 = arith.constant dense<0.000000e+00> : vector<8x256xf32>
    %162 = tpu.matmul %161, %159, %cst_117 {dimension_numbers = #tpu.dot_dimension_numbers<[1], [0], [0], [1], [0, 0, 1, 1], [], []>} : vector<8x8xbf16>, vector<8x256xbf16>, vector<8x256xf32> -> vector<8x256xf32>
    %163 = arith.addf %158, %162 : vector<8x256xf32>
    %c0_118 = arith.constant 0 : index
    %c18_119 = arith.constant 18 : index
    %164 = vector.load %arg13[%c0_118, %c18_119] : memref<8x290xbf16, #tpu.memory_space<vmem>>, vector<8x256xbf16>
    %c0_i32_120 = arith.constant 0 : i32
    %165 = arith.sitofp %c0_i32_120 : i32 to bf16
    %166 = vector.broadcast %165 : bf16 to vector<8x256xbf16>
    %167 = arith.select %128, %164, %166 : vector<8x256xi1>, vector<8x256xbf16>
    %c5_121 = arith.constant 5 : index
    %c0_122 = arith.constant 0 : index
    %c0_123 = arith.constant 0 : index
    %168 = vector.load %arg5[%c5_121, %c0_122, %c0_123] : memref<9x8x8xbf16, #tpu.memory_space<vmem>>, vector<1x8x8xbf16>
    %169 = vector.shape_cast %168 : vector<1x8x8xbf16> to vector<8x8xbf16>
    %cst_124 = arith.constant dense<0.000000e+00> : vector<8x256xf32>
    %170 = tpu.matmul %169, %167, %cst_124 {dimension_numbers = #tpu.dot_dimension_numbers<[1], [0], [0], [1], [0, 0, 1, 1], [], []>} : vector<8x8xbf16>, vector<8x256xbf16>, vector<8x256xf32> -> vector<8x256xf32>
    %171 = arith.addf %163, %170 : vector<8x256xf32>
    %c0_125 = arith.constant 0 : index
    %c32_126 = arith.constant 32 : index
    %172 = vector.load %arg13[%c0_125, %c32_126] : memref<8x290xbf16, #tpu.memory_space<vmem>>, vector<8x256xbf16>
    %c0_i32_127 = arith.constant 0 : i32
    %173 = arith.sitofp %c0_i32_127 : i32 to bf16
    %174 = vector.broadcast %173 : bf16 to vector<8x256xbf16>
    %175 = arith.select %126, %172, %174 : vector<8x256xi1>, vector<8x256xbf16>
    %c6_128 = arith.constant 6 : index
    %c0_129 = arith.constant 0 : index
    %c0_130 = arith.constant 0 : index
    %176 = vector.load %arg5[%c6_128, %c0_129, %c0_130] : memref<9x8x8xbf16, #tpu.memory_space<vmem>>, vector<1x8x8xbf16>
    %177 = vector.shape_cast %176 : vector<1x8x8xbf16> to vector<8x8xbf16>
    %cst_131 = arith.constant dense<0.000000e+00> : vector<8x256xf32>
    %178 = tpu.matmul %177, %175, %cst_131 {dimension_numbers = #tpu.dot_dimension_numbers<[1], [0], [0], [1], [0, 0, 1, 1], [], []>} : vector<8x8xbf16>, vector<8x256xbf16>, vector<8x256xf32> -> vector<8x256xf32>
    %179 = arith.addf %171, %178 : vector<8x256xf32>
    %c0_132 = arith.constant 0 : index
    %c33_133 = arith.constant 33 : index
    %180 = vector.load %arg13[%c0_132, %c33_133] : memref<8x290xbf16, #tpu.memory_space<vmem>>, vector<8x256xbf16>
    %c7_134 = arith.constant 7 : index
    %c0_135 = arith.constant 0 : index
    %c0_136 = arith.constant 0 : index
    %181 = vector.load %arg5[%c7_134, %c0_135, %c0_136] : memref<9x8x8xbf16, #tpu.memory_space<vmem>>, vector<1x8x8xbf16>
    %182 = vector.shape_cast %181 : vector<1x8x8xbf16> to vector<8x8xbf16>
    %cst_137 = arith.constant dense<0.000000e+00> : vector<8x256xf32>
    %183 = tpu.matmul %182, %180, %cst_137 {dimension_numbers = #tpu.dot_dimension_numbers<[1], [0], [0], [1], [0, 0, 1, 1], [], []>} : vector<8x8xbf16>, vector<8x256xbf16>, vector<8x256xf32> -> vector<8x256xf32>
    %184 = arith.addf %179, %183 : vector<8x256xf32>
    %c0_138 = arith.constant 0 : index
    %c34_139 = arith.constant 34 : index
    %185 = vector.load %arg13[%c0_138, %c34_139] : memref<8x290xbf16, #tpu.memory_space<vmem>>, vector<8x256xbf16>
    %c0_i32_140 = arith.constant 0 : i32
    %186 = arith.sitofp %c0_i32_140 : i32 to bf16
    %187 = vector.broadcast %186 : bf16 to vector<8x256xbf16>
    %188 = arith.select %128, %185, %187 : vector<8x256xi1>, vector<8x256xbf16>
    %c8_141 = arith.constant 8 : index
    %c0_142 = arith.constant 0 : index
    %c0_143 = arith.constant 0 : index
    %189 = vector.load %arg5[%c8_141, %c0_142, %c0_143] : memref<9x8x8xbf16, #tpu.memory_space<vmem>>, vector<1x8x8xbf16>
    %190 = vector.shape_cast %189 : vector<1x8x8xbf16> to vector<8x8xbf16>
    %cst_144 = arith.constant dense<0.000000e+00> : vector<8x256xf32>
    %191 = tpu.matmul %190, %188, %cst_144 {dimension_numbers = #tpu.dot_dimension_numbers<[1], [0], [0], [1], [0, 0, 1, 1], [], []>} : vector<8x8xbf16>, vector<8x256xbf16>, vector<8x256xf32> -> vector<8x256xf32>
    %192 = arith.addf %184, %191 : vector<8x256xf32>
    %193 = vector.broadcast %106 : vector<8x1xf32> to vector<8x256xf32>
    %194 = arith.mulf %192, %193 : vector<8x256xf32>
    %195 = vector.broadcast %107 : vector<8x1xf32> to vector<8x256xf32>
    %196 = arith.addf %194, %195 : vector<8x256xf32>
    %c0_145 = arith.constant 0 : index
    %c0_146 = arith.constant 0 : index
    %197 = vector.load %arg8[%c0_145, %c0_146] : memref<8x8xbf16, #tpu.memory_space<vmem>>, vector<8x8xbf16>
    %cst_147 = arith.constant dense<0.000000e+00> : vector<8x256xf32>
    %198 = tpu.matmul %197, %1, %cst_147 {dimension_numbers = #tpu.dot_dimension_numbers<[1], [0], [0], [1], [0, 0, 1, 1], [], []>} : vector<8x8xbf16>, vector<8x256xbf16>, vector<8x256xf32> -> vector<8x256xf32>
    %c0_148 = arith.constant 0 : index
    %c0_149 = arith.constant 0 : index
    %199 = vector.load %arg9[%c0_148, %c0_149] : memref<8x1xf32, #tpu.memory_space<vmem>>, vector<8x1xf32>
    %200 = vector.broadcast %199 : vector<8x1xf32> to vector<8x256xf32>
    %201 = arith.mulf %198, %200 : vector<8x256xf32>
    %c0_150 = arith.constant 0 : index
    %c0_151 = arith.constant 0 : index
    %202 = vector.load %arg10[%c0_150, %c0_151] : memref<8x1xf32, #tpu.memory_space<vmem>>, vector<8x1xf32>
    %203 = vector.broadcast %202 : vector<8x1xf32> to vector<8x256xf32>
    %204 = arith.addf %201, %203 : vector<8x256xf32>
    %205 = arith.addf %196, %204 : vector<8x256xf32>
    %cst_152 = arith.constant 0.000000e+00 : f32
    %206 = vector.broadcast %cst_152 : f32 to vector<8x256xf32>
    %207 = arith.maximumf %205, %206 : vector<8x256xf32>
    %208 = arith.truncf %207 : vector<8x256xf32> to vector<8x256xbf16>
    %c0_153 = arith.constant 0 : index
    %c0_154 = arith.constant 0 : index
    %c0_155 = arith.constant 0 : index
    %209 = vector.load %arg11[%c0_153, %c0_154, %c0_155] : memref<1x8x256xbf16, #tpu.memory_space<vmem>>, vector<1x8x256xbf16>
    %210 = vector.shape_cast %209 : vector<1x8x256xbf16> to vector<8x256xbf16>
    %211 = vector.shape_cast %208 : vector<8x256xbf16> to vector<1x8x256xbf16>
    tpu.vector_store %arg11[%c0_153, %c0_154, %c0_155], %211 {strides = array<i32>} : memref<1x8x256xbf16, #tpu.memory_space<vmem>>, vector<1x8x256xbf16>,
    return
  }
  func.func @transform_0(%arg0: i32) -> (i32, i32, i32) {
    %c0_i32 = arith.constant 0 : i32
    %c0_i32_0 = arith.constant 0 : i32
    %c0_i32_1 = arith.constant 0 : i32
    return %arg0, %c0_i32, %c0_i32_0 : i32, i32, i32
  }
  func.func @transform_1(%arg0: i32) -> (i32, i32, i32) {
    %c0_i32 = arith.constant 0 : i32
    %c0_i32_0 = arith.constant 0 : i32
    %c0_i32_1 = arith.constant 0 : i32
    %c0_i32_2 = arith.constant 0 : i32
    return %c0_i32, %c0_i32_0, %c0_i32_1 : i32, i32, i32
  }
  func.func @transform_2(%arg0: i32) -> (i32, i32) {
    %c0_i32 = arith.constant 0 : i32
    %c0_i32_0 = arith.constant 0 : i32
    %c0_i32_1 = arith.constant 0 : i32
    return %c0_i32, %c0_i32_0 : i32, i32
  }
  func.func @transform_3(%arg0: i32) -> (i32, i32) {
    %c0_i32 = arith.constant 0 : i32
    %c0_i32_0 = arith.constant 0 : i32
    %c0_i32_1 = arith.constant 0 : i32
    return %c0_i32, %c0_i32_0 : i32, i32
  }
  func.func @transform_4(%arg0: i32) -> (i32, i32, i32) {
    %c0_i32 = arith.constant 0 : i32
    %c0_i32_0 = arith.constant 0 : i32
    %c0_i32_1 = arith.constant 0 : i32
    %c0_i32_2 = arith.constant 0 : i32
    return %c0_i32, %c0_i32_0, %c0_i32_1 : i32, i32, i32
  }
  func.func @transform_5(%arg0: i32) -> (i32, i32) {
    %c0_i32 = arith.constant 0 : i32
    %c0_i32_0 = arith.constant 0 : i32
    %c0_i32_1 = arith.constant 0 : i32
    return %c0_i32, %c0_i32_0 : i32, i32
  }
  func.func @transform_6(%arg0: i32) -> (i32, i32) {
    %c0_i32 = arith.constant 0 : i32
    %c0_i32_0 = arith.constant 0 : i32
    %c0_i32_1 = arith.constant 0 : i32
    return %c0_i32, %c0_i32_0 : i32, i32
  }
  func.func @transform_7(%arg0: i32) -> (i32, i32) {
    %c0_i32 = arith.constant 0 : i32
    %c0_i32_0 = arith.constant 0 : i32
    %c0_i32_1 = arith.constant 0 : i32
    return %c0_i32, %c0_i32_0 : i32, i32
  }
  func.func @transform_8(%arg0: i32) -> (i32, i32) {
    %c0_i32 = arith.constant 0 : i32
    %c0_i32_0 = arith.constant 0 : i32
    %c0_i32_1 = arith.constant 0 : i32
    return %c0_i32, %c0_i32_0 : i32, i32
  }
  func.func @transform_9(%arg0: i32) -> (i32, i32) {
    %c0_i32 = arith.constant 0 : i32
    %c0_i32_0 = arith.constant 0 : i32
    %c0_i32_1 = arith.constant 0 : i32
    return %c0_i32, %c0_i32_0 : i32, i32
  }
  func.func @transform_10(%arg0: i32) -> (i32, i32, i32) {
    %c0_i32 = arith.constant 0 : i32
    %c0_i32_0 = arith.constant 0 : i32
    %c0_i32_1 = arith.constant 0 : i32
    return %arg0, %c0_i32, %c0_i32_0 : i32, i32, i32
  }
}

</mosaic_0001>

<llo_original>
// kernel: tpu_custom_call.1
$region0: #{tpu_custom_call.1}
  #allocation0 [shape = 'u32[]', space=smem, size = 0x4, offset = 0x4, fixed_abs, tag = 'smem constant byte address 0x4 - core index']
  #allocation1 [shape = 'u32[144,128]{1,0:T(1,128)}', space=vmem, size = 0x12000, scoped, tag = 'internal scratch']
  #allocation2 [shape = 'bf16[8,290]{1,0:T(8,128)(2,1)}', space=vmem, size = 0x1800, scoped, tag = 'scratch operand']
  #allocation3 [shape = 'bf16[8,290]{1,0:T(8,128)(2,1)}', space=vmem, size = 0x1800, scoped, tag = 'scratch operand']
  %s0 = inlined_call_operand.vmem [shape: bf16[2,8,256], index: 0, kind: input, shape index: {}]
  %s1 = inlined_call_operand.vmem [shape: bf16[9,8,8], index: 1, kind: input, shape index: {}]
  %s2 = inlined_call_operand.vmem [shape: f32[8,1], index: 2, kind: input, shape index: {}]
  %s3 = inlined_call_operand.vmem [shape: f32[8,1], index: 3, kind: input, shape index: {}]
  %s4 = inlined_call_operand.vmem [shape: bf16[9,8,8], index: 4, kind: input, shape index: {}]
  %s5 = inlined_call_operand.vmem [shape: f32[8,1], index: 5, kind: input, shape index: {}]
  %s6 = inlined_call_operand.vmem [shape: f32[8,1], index: 6, kind: input, shape index: {}]
  %s7 = inlined_call_operand.vmem [shape: bf16[8,8], index: 7, kind: input, shape index: {}]
  %s8 = inlined_call_operand.vmem [shape: f32[8,1], index: 8, kind: input, shape index: {}]
  %s9 = inlined_call_operand.vmem [shape: f32[8,1], index: 9, kind: input, shape index: {}]
  %s10 = inlined_call_operand.hbm [shape: bf16[2,8,256], index: 10, kind: output, shape index: {}]
  %s11 = sld [smem:[#allocation0]]
  $region73: #{tpu_custom_call.1} parent=0
    _
  %s13 = ssub.s32 1, %s11
  %s14 = scalar_select 0, %s13, %s11
  $region1: #{tpu_custom_call.1} parent=0
    #allocation4 [shape = 'u8[8192]{0}', space=vmem, size = 0x2000, scoped, tag = 'output window, operand 0']
    #allocation5 [shape = 's32[2]{0}', space=sflag, size = 0x8, scoped, tag = 'scoped memory for tpu_custom_call.1']
    %15 = vsyncpa [#allocation5], 0
    %s16 = scalar_lea.sflag [#allocation5], 1
    %17 = vsyncpa %s16, 0
    loop: start=0, step=1, limit=4
    $region2: #{tpu_custom_call.1} parent=1 // loop_pre_header
      _
    $region3: #{tpu_custom_call.1} parent=1 // loop_header
      %s19 = sphi 0, %s23
      %p20 = scmp.ge.s32.totalorder %s19, 4
      %s29 = sphi 0, %s31
      %s32 = sphi 0, %s29
      %s33 = sphi 0, %s32
      %s49 = sphi 0, %s33
      %s53 = sphi 0, %s53
      %s55 = sphi 0, %s53
      %s56 = sphi 0, %s55
      %s70 = sphi 0, %s56
      %s74 = sphi 0, %s74
      %s76 = sphi 0, %s74
      %s77 = sphi 0, %s76
      %s91 = sphi 0, %s77
      %s95 = sphi 0, %s95
      %s97 = sphi 0, %s95
      %s98 = sphi 0, %s97
      %s112 = sphi 0, %s98
      %s116 = sphi 0, %s116
      %s118 = sphi 0, %s116
      %s119 = sphi 0, %s118
      %s133 = sphi 0, %s119
      %s137 = sphi 0, %s137
      %s139 = sphi 0, %s137
      %s140 = sphi 0, %s139
      %s154 = sphi 0, %s140
      %s158 = sphi 0, %s158
      %s160 = sphi 0, %s158
      %s161 = sphi 0, %s160
      %s175 = sphi 0, %s161
      %s179 = sphi 0, %s179
      %s181 = sphi 0, %s179
      %s182 = sphi 0, %s181
      %s196 = sphi 0, %s182
      %s200 = sphi 0, %s200
      %s202 = sphi 0, %s200
      %s203 = sphi 0, %s202
      %s217 = sphi 0, %s203
      %s221 = sphi 0, %s221
      %s223 = sphi 0, %s221
      %s224 = sphi 0, %s223
      %s238 = sphi 0, %s224
      %s244 = sphi 0, %s246
      %s247 = sphi 0, %s244
      %s248 = sphi 0, %s247
      %s264 = sphi 0, %s248
    $region4: #{tpu_custom_call.1} parent=1 // loop_header_branch
      %22 = sbr.rel (%p20) target = $region8
    $region5: #{tpu_custom_call.1} parent=1 // loop_body
      %s24 = ssub.s32 %s19, 1
      %s25 = ssub.s32 %s19, 2
      %s26 = sadd.s32 %s19, 1
      %s27 = ssub.s32 %s19, %s26
      %p28 = scmp.eq.s32.totalorder %s27, 0
      %s30 = sadd.s32 %s29, 1
      %s31 = scalar_select %p28, %s29, %s30
      %p34 = pneg %p28
      %p35 = scmp.eq.s32.totalorder %s19, 1
      %p36 = por %p34, %p35
      %p37 = scmp.ne.s32.totalorder %s29, %s32
      %p38 = scmp.eq.s32.totalorder %s19, 0
      %p39 = por %p37, %p38
      %p40 = scmp.ne.s32.totalorder %s29, %s32
      %p41 = scmp.eq.s32.totalorder %s24, 1
      %p42 = por %p40, %p41
      %p43 = scmp.ne.s32.totalorder %s32, %s33
      %p44 = scmp.eq.s32.totalorder %s24, 0
      %p45 = por %p43, %p44
      %p46 = scmp.ne.s32.totalorder %s32, %s33
      %p47 = scmp.eq.s32.totalorder %s25, 1
      %p48 = por %p46, %p47
      %p50 = scmp.ne.s32.totalorder %s33, %s49
      %p51 = scmp.eq.s32.totalorder %s25, 0
      %p52 = por %p50, %p51
      %s54 = sadd.s32 %s53, 1
      %p57 = scmp.eq.s32.totalorder %s19, 1
      %p58 = scmp.ne.s32.totalorder %s53, %s55
      %p59 = scmp.eq.s32.totalorder %s19, 0
      %p60 = por %p58, %p59
      %p61 = scmp.ne.s32.totalorder %s53, %s55
      %p62 = scmp.eq.s32.totalorder %s24, 1
      %p63 = por %p61, %p62
      %p64 = scmp.ne.s32.totalorder %s55, %s56
      %p65 = scmp.eq.s32.totalorder %s24, 0
      %p66 = por %p64, %p65
      %p67 = scmp.ne.s32.totalorder %s55, %s56
      %p68 = scmp.eq.s32.totalorder %s25, 1
      %p69 = por %p67, %p68
      %p71 = scmp.ne.s32.totalorder %s56, %s70
      %p72 = scmp.eq.s32.totalorder %s25, 0
      %p73 = por %p71, %p72
      %s75 = sadd.s32 %s74, 1
      %p78 = scmp.eq.s32.totalorder %s19, 1
      %p79 = scmp.ne.s32.totalorder %s74, %s76
      %p80 = scmp.eq.s32.totalorder %s19, 0
      %p81 = por %p79, %p80
      %p82 = scmp.ne.s32.totalorder %s74, %s76
      %p83 = scmp.eq.s32.totalorder %s24, 1
      %p84 = por %p82, %p83
      %p85 = scmp.ne.s32.totalorder %s76, %s77
      %p86 = scmp.eq.s32.totalorder %s24, 0
      %p87 = por %p85, %p86
      %p88 = scmp.ne.s32.totalorder %s76, %s77
      %p89 = scmp.eq.s32.totalorder %s25, 1
      %p90 = por %p88, %p89
      %p92 = scmp.ne.s32.totalorder %s77, %s91
      %p93 = scmp.eq.s32.totalorder %s25, 0
      %p94 = por %p92, %p93
      %s96 = sadd.s32 %s95, 1
      %p99 = scmp.eq.s32.totalorder %s19, 1
      %p100 = scmp.ne.s32.totalorder %s95, %s97
      %p101 = scmp.eq.s32.totalorder %s19, 0
      %p102 = por %p100, %p101
      %p103 = scmp.ne.s32.totalorder %s95, %s97
      %p104 = scmp.eq.s32.totalorder %s24, 1
      %p105 = por %p103, %p104
      %p106 = scmp.ne.s32.totalorder %s97, %s98
      %p107 = scmp.eq.s32.totalorder %s24, 0
      %p108 = por %p106, %p107
      %p109 = scmp.ne.s32.totalorder %s97, %s98
      %p110 = scmp.eq.s32.totalorder %s25, 1
      %p111 = por %p109, %p110
      %p113 = scmp.ne.s32.totalorder %s98, %s112
      %p114 = scmp.eq.s32.totalorder %s25, 0
      %p115 = por %p113, %p114
      %s117 = sadd.s32 %s116, 1
      %p120 = scmp.eq.s32.totalorder %s19, 1
      %p121 = scmp.ne.s32.totalorder %s116, %s118
      %p122 = scmp.eq.s32.totalorder %s19, 0
      %p123 = por %p121, %p122
      %p124 = scmp.ne.s32.totalorder %s116, %s118
      %p125 = scmp.eq.s32.totalorder %s24, 1
      %p126 = por %p124, %p125
      %p127 = scmp.ne.s32.totalorder %s118, %s119
      %p128 = scmp.eq.s32.totalorder %s24, 0
      %p129 = por %p127, %p128
      %p130 = scmp.ne.s32.totalorder %s118, %s119
      %p131 = scmp.eq.s32.totalorder %s25, 1
      %p132 = por %p130, %p131
      %p134 = scmp.ne.s32.totalorder %s119, %s133
      %p135 = scmp.eq.s32.totalorder %s25, 0
      %p136 = por %p134, %p135
      %s138 = sadd.s32 %s137, 1
      %p141 = scmp.eq.s32.totalorder %s19, 1
      %p142 = scmp.ne.s32.totalorder %s137, %s139
      %p143 = scmp.eq.s32.totalorder %s19, 0
      %p144 = por %p142, %p143
      %p145 = scmp.ne.s32.totalorder %s137, %s139
      %p146 = scmp.eq.s32.totalorder %s24, 1
      %p147 = por %p145, %p146
      %p148 = scmp.ne.s32.totalorder %s139, %s140
      %p149 = scmp.eq.s32.totalorder %s24, 0
      %p150 = por %p148, %p149
      %p151 = scmp.ne.s32.totalorder %s139, %s140
      %p152 = scmp.eq.s32.totalorder %s25, 1
      %p153 = por %p151, %p152
      %p155 = scmp.ne.s32.totalorder %s140, %s154
      %p156 = scmp.eq.s32.totalorder %s25, 0
      %p157 = por %p155, %p156
      %s159 = sadd.s32 %s158, 1
      %p162 = scmp.eq.s32.totalorder %s19, 1
      %p163 = scmp.ne.s32.totalorder %s158, %s160
      %p164 = scmp.eq.s32.totalorder %s19, 0
      %p165 = por %p163, %p164
      %p166 = scmp.ne.s32.totalorder %s158, %s160
      %p167 = scmp.eq.s32.totalorder %s24, 1
      %p168 = por %p166, %p167
      %p169 = scmp.ne.s32.totalorder %s160, %s161
      %p170 = scmp.eq.s32.totalorder %s24, 0
      %p171 = por %p169, %p170
      %p172 = scmp.ne.s32.totalorder %s160, %s161
      %p173 = scmp.eq.s32.totalorder %s25, 1
      %p174 = por %p172, %p173
      %p176 = scmp.ne.s32.totalorder %s161, %s175
      %p177 = scmp.eq.s32.totalorder %s25, 0
      %p178 = por %p176, %p177
      %s180 = sadd.s32 %s179, 1
      %p183 = scmp.eq.s32.totalorder %s19, 1
      %p184 = scmp.ne.s32.totalorder %s179, %s181
      %p185 = scmp.eq.s32.totalorder %s19, 0
      %p186 = por %p184, %p185
      %p187 = scmp.ne.s32.totalorder %s179, %s181
      %p188 = scmp.eq.s32.totalorder %s24, 1
      %p189 = por %p187, %p188
      %p190 = scmp.ne.s32.totalorder %s181, %s182
      %p191 = scmp.eq.s32.totalorder %s24, 0
      %p192 = por %p190, %p191
      %p193 = scmp.ne.s32.totalorder %s181, %s182
      %p194 = scmp.eq.s32.totalorder %s25, 1
      %p195 = por %p193, %p194
      %p197 = scmp.ne.s32.totalorder %s182, %s196
      %p198 = scmp.eq.s32.totalorder %s25, 0
      %p199 = por %p197, %p198
      %s201 = sadd.s32 %s200, 1
      %p204 = scmp.eq.s32.totalorder %s19, 1
      %p205 = scmp.ne.s32.totalorder %s200, %s202
      %p206 = scmp.eq.s32.totalorder %s19, 0
      %p207 = por %p205, %p206
      %p208 = scmp.ne.s32.totalorder %s200, %s202
      %p209 = scmp.eq.s32.totalorder %s24, 1
      %p210 = por %p208, %p209
      %p211 = scmp.ne.s32.totalorder %s202, %s203
      %p212 = scmp.eq.s32.totalorder %s24, 0
      %p213 = por %p211, %p212
      %p214 = scmp.ne.s32.totalorder %s202, %s203
      %p215 = scmp.eq.s32.totalorder %s25, 1
      %p216 = por %p214, %p215
      %p218 = scmp.ne.s32.totalorder %s203, %s217
      %p219 = scmp.eq.s32.totalorder %s25, 0
      %p220 = por %p218, %p219
      %s222 = sadd.s32 %s221, 1
      %p225 = scmp.eq.s32.totalorder %s19, 1
      %p226 = scmp.ne.s32.totalorder %s221, %s223
      %p227 = scmp.eq.s32.totalorder %s19, 0
      %p228 = por %p226, %p227
      %p229 = scmp.ne.s32.totalorder %s221, %s223
      %p230 = scmp.eq.s32.totalorder %s24, 1
      %p231 = por %p229, %p230
      %p232 = scmp.ne.s32.totalorder %s223, %s224
      %p233 = scmp.eq.s32.totalorder %s24, 0
      %p234 = por %p232, %p233
      %p235 = scmp.ne.s32.totalorder %s223, %s224
      %p236 = scmp.eq.s32.totalorder %s25, 1
      %p237 = por %p235, %p236
      %p239 = scmp.ne.s32.totalorder %s224, %s238
      %p240 = scmp.eq.s32.totalorder %s25, 0
      %p241 = por %p239, %p240
      %s242 = ssub.s32 %s19, %s26
      %p243 = scmp.eq.s32.totalorder %s242, 0
      %s245 = sadd.s32 %s244, 1
      %s246 = scalar_select %p243, %s244, %s245
      %p249 = pneg %p243
      %p250 = scmp.eq.s32.totalorder %s19, 1
      %p251 = por %p249, %p250
      %p252 = scmp.ne.s32.totalorder %s244, %s247
      %p253 = scmp.eq.s32.totalorder %s19, 0
      %p254 = por %p252, %p253
      %p255 = scmp.ne.s32.totalorder %s244, %s247
      %p256 = scmp.eq.s32.totalorder %s24, 1
      %p257 = por %p255, %p256
      %p258 = scmp.ne.s32.totalorder %s247, %s248
      %p259 = scmp.eq.s32.totalorder %s24, 0
      %p260 = por %p258, %p259
      %p261 = scmp.ne.s32.totalorder %s247, %s248
      %p262 = scmp.eq.s32.totalorder %s25, 1
      %p263 = por %p261, %p262
      %p265 = scmp.ne.s32.totalorder %s248, %s264
      %p266 = scmp.eq.s32.totalorder %s25, 0
      %p267 = por %p265, %p266
      %p268 = scmp.le.s32.totalorder 1, %s19
      %p269 = scmp.lt.s32.totalorder %s19, 3
      %p270 = pnand %p268, %p269
      %p271 = pneg %p270
      // Predicated region
      $region9: #{tpu_custom_call.1} parent=5 // pred_check
        _
      $region10: #{tpu_custom_call.1} parent=5 // pred_check_branch
        %273 = sbr.rel (%p270) target = $region12
      $region11: #{tpu_custom_call.1} parent=5 // pred_region
        %s274 = ssub.s32 %s19, 1
        // Predicated region
        $region13: #{tpu_custom_call.1} parent=11 // pred_check
          %p275 = pneg %p66
        $region14: #{tpu_custom_call.1} parent=11 // pred_check_branch
          %277 = sbr.rel (%p275) target = $region16
        $region15: #{tpu_custom_call.1} parent=11 // pred_region
          _
        $region16: #{tpu_custom_call.1} parent=11 // pred_fallthru
          _
        // Predicated region
        $region17: #{tpu_custom_call.1} parent=11 // pred_check
          %p278 = pneg %p87
        $region18: #{tpu_custom_call.1} parent=11 // pred_check_branch
          %280 = sbr.rel (%p278) target = $region20
        $region19: #{tpu_custom_call.1} parent=11 // pred_region
          _
        $region20: #{tpu_custom_call.1} parent=11 // pred_fallthru
          _
        // Predicated region
        $region21: #{tpu_custom_call.1} parent=11 // pred_check
          %p281 = pneg %p108
        $region22: #{tpu_custom_call.1} parent=11 // pred_check_branch
          %283 = sbr.rel (%p281) target = $region24
        $region23: #{tpu_custom_call.1} parent=11 // pred_region
          _
        $region24: #{tpu_custom_call.1} parent=11 // pred_fallthru
          _
        // Predicated region
        $region25: #{tpu_custom_call.1} parent=11 // pred_check
          %p284 = pneg %p129
        $region26: #{tpu_custom_call.1} parent=11 // pred_check_branch
          %286 = sbr.rel (%p284) target = $region28
        $region27: #{tpu_custom_call.1} parent=11 // pred_region
          _
        $region28: #{tpu_custom_call.1} parent=11 // pred_fallthru
          _
        // Predicated region
        $region29: #{tpu_custom_call.1} parent=11 // pred_check
          %p287 = pneg %p150
        $region30: #{tpu_custom_call.1} parent=11 // pred_check_branch
          %289 = sbr.rel (%p287) target = $region32
        $region31: #{tpu_custom_call.1} parent=11 // pred_region
          _
        $region32: #{tpu_custom_call.1} parent=11 // pred_fallthru
          _
        // Predicated region
        $region33: #{tpu_custom_call.1} parent=11 // pred_check
          %p290 = pneg %p171
        $region34: #{tpu_custom_call.1} parent=11 // pred_check_branch
          %292 = sbr.rel (%p290) target = $region36
        $region35: #{tpu_custom_call.1} parent=11 // pred_region
          _
        $region36: #{tpu_custom_call.1} parent=11 // pred_fallthru
          _
        // Predicated region
        $region37: #{tpu_custom_call.1} parent=11 // pred_check
          %p293 = pneg %p192
        $region38: #{tpu_custom_call.1} parent=11 // pred_check_branch
          %295 = sbr.rel (%p293) target = $region40
        $region39: #{tpu_custom_call.1} parent=11 // pred_region
          _
        $region40: #{tpu_custom_call.1} parent=11 // pred_fallthru
          _
        // Predicated region
        $region41: #{tpu_custom_call.1} parent=11 // pred_check
          %p296 = pneg %p213
        $region42: #{tpu_custom_call.1} parent=11 // pred_check_branch
          %298 = sbr.rel (%p296) target = $region44
        $region43: #{tpu_custom_call.1} parent=11 // pred_region
          _
        $region44: #{tpu_custom_call.1} parent=11 // pred_fallthru
          _
        // Predicated region
        $region45: #{tpu_custom_call.1} parent=11 // pred_check
          %p299 = pneg %p234
        $region46: #{tpu_custom_call.1} parent=11 // pred_check_branch
          %301 = sbr.rel (%p299) target = $region48
        $region47: #{tpu_custom_call.1} parent=11 // pred_region
          _
        $region48: #{tpu_custom_call.1} parent=11 // pred_fallthru
          _
      $region12: #{tpu_custom_call.1} parent=5 // pred_fallthru
        _
      %p302 = scmp.lt.s32.totalorder %s19, 2
      // Predicated region
      $region49: #{tpu_custom_call.1} parent=5 // pred_check
        %p303 = pneg %p302
      $region50: #{tpu_custom_call.1} parent=5 // pred_check_branch
        %305 = sbr.rel (%p303) target = $region52
      $region51: #{tpu_custom_call.1} parent=5 // pred_region
        // Predicated region
        $region53: #{tpu_custom_call.1} parent=51 // pred_check
          %p306 = pneg %p39
        $region54: #{tpu_custom_call.1} parent=51 // pred_check_branch
          %308 = sbr.rel (%p306) target = $region56
        $region55: #{tpu_custom_call.1} parent=51 // pred_region
          %p309 = scmp.lt.s32.totalorder %s19, 1
          %s310 = scalar_select %p309, %s19, 1
          %s311 = smul.addr %s310, 2
          %s312 = smul.addr %s311, 4
          %s313 = scalar_lea.vmem %s0, %s312
        $region56: #{tpu_custom_call.1} parent=51 // pred_fallthru
          _
      $region52: #{tpu_custom_call.1} parent=5 // pred_fallthru
        _
      %p314 = scmp.le.s32.totalorder 1, %s19
      %p315 = scmp.lt.s32.totalorder %s19, 3
      %p316 = pnand %p314, %p315
      %p317 = pneg %p316
      // Predicated region
      $region57: #{tpu_custom_call.1} parent=5 // pred_check
        _
      $region58: #{tpu_custom_call.1} parent=5 // pred_check_branch
        %319 = sbr.rel (%p316) target = $region60
      $region59: #{tpu_custom_call.1} parent=5 // pred_region
        %s320 = ssub.s32 %s19, 1
        %p321 = scmp.lt.s32.totalorder %s24, 1
        %s322 = scalar_select %p321, %s24, 1
        %s323 = smul.addr %s322, 2
        %s324 = smul.addr %s323, 4
        %s325 = scalar_lea.vmem %s0, %s324
        %p326 = pneg %p45
        %p327 = pneg %p42
        %p328 = pneg %p66
        %p329 = pneg %p63
        %p330 = pneg %p87
        %p331 = pneg %p84
        %p332 = pneg %p108
        %p333 = pneg %p105
        %p334 = pneg %p129
        %p335 = pneg %p126
        %p336 = pneg %p150
        %p337 = pneg %p147
        %p338 = pneg %p171
        %p339 = pneg %p168
        %p340 = pneg %p192
        %p341 = pneg %p189
        %p342 = pneg %p213
        %p343 = pneg %p210
        %p344 = pneg %p234
        %p345 = pneg %p231
        %p346 = pneg %p260
        %p347 = pneg %p257
        %s348 = sand.u32 %s247, 1
        %s349 = scalar_lea.sflag [#allocation5], %s348
        %s350 = sand.u32 %s247, 1
        %s351 = smul.addr %s350, 8
        %s352 = scalar_lea.vmem [#allocation4], %s351
        %p353 = scmp.lt.s32.totalorder %s24, 1
        %s354 = scalar_select %p353, %s24, 1
        %s355 = smul.addr %s354, 2
        %s356 = smul.addr %s355, 4
        %s357 = scalar_lea.vmem %s0, %s356
        %v361 = vld [vmem:[%s357] sm:$0xff]
        %vm362 = vcmask 134144
        %363 = vst.msk [vmem:[#allocation2] sm:$0xf] %vm362, 0
        %vm364 = vcmask 273544
        %365 = vst.msk [vmem:[#allocation2 + $0x8] sm:$0xf] %vm364, 0
        %367 = vrot.lane.b32.xlu0 %v361, 17
        %v368 = vpop.permute.xlu0 %367
        %v369 = vrot.slane %v368, 4
        %vm370 = vcmask 138240
        %v371 = vsel %vm370, %v369, %v368
        %vm374 = vcmask 1043592
        %vm375 = vcmask 1047556
        %vm376 = vmor %vm375, %vm374
        %377 = vst.msk [vmem:[#allocation2] sm:$0xff] %vm376, %v371
        %378 = vst.msk [vmem:[#allocation2 + $0x8] sm:$0xf] %vm362, %v369
        %v379 = vld [vmem:[%s2] sm:$0xff]
        %v380 = vld [vmem:[%s3] sm:$0xff]
        %v381 = vlaneseq
        %v382 = vand.u32 %v381, 127
        %v383 = vadd.s32 %v382, 128
        %vm384 = vcmp.lt.s32.totalorder %v382, 0
        %v385 = vsub.s32 0, %v382
        %v386 = vsel %vm384, %v385, %v382
        %v387 = vshrl.u32 %v386, 4
        %v388 = vand.u32 %v386, 15
        %v389 = vsub.s32 0, %v388
        %v390 = vsel %vm384, %v389, %v388
        %vm391 = vcmp.lt.s32.totalorder %v383, 0
        %v392 = vsub.s32 0, %v383
        %v393 = vsel %vm391, %v392, %v383
        %v394 = vshrl.u32 %v393, 4
        %v395 = vand.u32 %v393, 15
        %v396 = vsub.s32 0, %v395
        %v397 = vsel %vm391, %v396, %v395
        %vm398 = vcmp.ne.s32.totalorder %v390, 0
        %vm399 = vcmp.ne.s32.totalorder %v397, 0
        %vm400 = vcmp.lt.s32.totalorder %v390, 0
        %vm401 = vcmp.lt.s32.totalorder %v397, 0
        %vm402 = vmand %vm400, %vm398
        %vm403 = vmand %vm401, %vm399
        %v404 = vadd.s32 %v390, 16
        %v405 = vadd.s32 %v397, 16
        %v406 = vsel %vm402, %v404, %v390
        %v407 = vsel %vm403, %v405, %v397
        %vm408 = vcmp.gt.s32.totalorder %v406, 0
        %vm409 = vcmp.gt.s32.totalorder %v407, 0
        %vm410 = vcmp.lt.s32.totalorder %v406, 15
        %vm411 = vcmp.lt.s32.totalorder %v407, 15
        %v412 = vld [vmem:[#allocation2] sm:$0xff]
        %vm413 = vmpackc.low %vm409, %vm408
        %v414 = vsel %vm413, %v412, 0
        %v415 = vld [vmem:[%s1] sm:$0xf]
        %v416 = vld [vmem:[#allocation2 + $0x8] sm:$0xf]
        %s417 = scalar_lea.vmem %s1, 4
        %v418 = vld [vmem:[%s417] sm:$0xf]
        %v421 = vunpack.c.l.b16 %v412
        %v422 = vunpack.c.h.b16 %v412
        %v423 = vunpack.c.l.b16 %v416
        %v424 = vpack.c.b16 %v421, %v421
        %v425 = vpack.c.b16 %v422, %v422
        %v426 = vpack.c.b16 %v423, %v423
        %427 = vrot.lane.b32.xlu0 %v424, 127
        %v428 = vpop.permute.xlu0 %427
        %429 = vrot.lane.b32.xlu0 %v425, 127
        %v430 = vpop.permute.xlu0 %429
        %431 = vrot.lane.b32.xlu0 %v426, 127
        %v432 = vpop.permute.xlu0 %431
        %vm433 = vcmask 1039360
        %v434 = vsel %vm433, %v428, %v430
        %v435 = vsel %vm433, %v430, %v432
        %vm436 = vcmask 64512
        %v438 = vsel %vm436, %v418, 0
        %vm440 = vcmask 1043456
        %v442 = vsel %vm440, %v434, 0
        %v445 = vsel %vm440, %v435, 0
        %447 = vmatprep.subr.bf16.mxu0 0
        %448 = vmatpush1.bf16.msra.mxu0 0
        %449 = vmatprep.subr.bf16.mxu0 0
        %450 = vmatpush1.bf16.msra.mxu0 0
        %451 = vmatprep.subr.bf16.mxu0 0
        %452 = vmatpush1.bf16.msra.mxu0 0
        %453 = vmatprep.subr.bf16.mxu0 0
        %454 = vmatpush1.bf16.msra.mxu0 0
        %455 = vmatprep.subr.bf16.mxu0 0
        %456 = vmatpush1.bf16.msra.mxu0 0
        %457 = vmatprep.subr.bf16.mxu0 0
        %458 = vmatpush1.bf16.msra.mxu0 0
        %459 = vmatprep.subr.bf16.mxu0 0
        %460 = vmatpush1.bf16.msra.mxu0 0
        %461 = vmatprep.subr.bf16.mxu0 %v445
        %462 = vmatpush1.bf16.msra.mxu0 %v442
        %463 = vmatprep.subr.bf16.mxu0 0
        %464 = vmatpush2.bf16.msra.mxu0 0
        %465 = vmatprep.subr.bf16.mxu0 0
        %466 = vmatpush2.bf16.msra.mxu0 0
        %467 = vmatprep.subr.bf16.mxu0 0
        %468 = vmatpush2.bf16.msra.mxu0 0
        %469 = vmatprep.subr.bf16.mxu0 0
        %470 = vmatpush2.bf16.msra.mxu0 0
        %471 = vmatprep.subr.bf16.mxu0 0
        %472 = vmatpush2.bf16.msra.mxu0 0
        %473 = vmatprep.subr.bf16.mxu0 0
        %474 = vmatpush2.bf16.msra.mxu0 0
        %475 = vmatprep.subr.bf16.mxu0 0
        %476 = vmatpush2.bf16.msra.mxu0 0
        %477 = vmatprep.subr.bf16.mxu0 0
        %478 = vmatpush2.bf16.msra.mxu0 0
        %479 = vmatprep.mubr.bf16.mxu0 0
        %480 = vmatmul.mubr.bf16.gmra.mxu0 %v438
        %v481 = vpop.f32.mrf.mxu0
        %v482 = vadd.f32 0.0, %v481
        %v483 = vpop.f32.mrf.mxu0
        %v484 = vadd.f32 0.0, %v483
        %v485 = vpop.f32.mrf.mxu0
        %v486 = vpop.f32.mrf.mxu0
        %487 = vdwg.mxu0
        %v489 = vunpack.c.l.b16 %v414
        %v490 = vunpack.c.h.b16 %v414
        %v491 = vpack.c.b16 %v489, %v489
        %v492 = vpack.c.b16 %v490, %v490
        %v494 = vsel %vm436, %v415, 0
        %v497 = vsel %vm440, %v491, 0
        %v500 = vsel %vm440, %v492, 0
        %502 = vmatprep.subr.bf16.mxu0 0
        %503 = vmatpush1.bf16.msra.mxu0 0
        %504 = vmatprep.subr.bf16.mxu0 0
        %505 = vmatpush1.bf16.msra.mxu0 0
        %506 = vmatprep.subr.bf16.mxu0 0
        %507 = vmatpush1.bf16.msra.mxu0 0
        %508 = vmatprep.subr.bf16.mxu0 0
        %509 = vmatpush1.bf16.msra.mxu0 0
        %510 = vmatprep.subr.bf16.mxu0 0
        %511 = vmatpush1.bf16.msra.mxu0 0
        %512 = vmatprep.subr.bf16.mxu0 0
        %513 = vmatpush1.bf16.msra.mxu0 0
        %514 = vmatprep.subr.bf16.mxu0 0
        %515 = vmatpush1.bf16.msra.mxu0 0
        %516 = vmatprep.subr.bf16.mxu0 %v500
        %517 = vmatpush1.bf16.msra.mxu0 %v497
        %518 = vmatprep.subr.bf16.mxu0 0
        %519 = vmatpush2.bf16.msra.mxu0 0
        %520 = vmatprep.subr.bf16.mxu0 0
        %521 = vmatpush2.bf16.msra.mxu0 0
        %522 = vmatprep.subr.bf16.mxu0 0
        %523 = vmatpush2.bf16.msra.mxu0 0
        %524 = vmatprep.subr.bf16.mxu0 0
        %525 = vmatpush2.bf16.msra.mxu0 0
        %526 = vmatprep.subr.bf16.mxu0 0
        %527 = vmatpush2.bf16.msra.mxu0 0
        %528 = vmatprep.subr.bf16.mxu0 0
        %529 = vmatpush2.bf16.msra.mxu0 0
        %530 = vmatprep.subr.bf16.mxu0 0
        %531 = vmatpush2.bf16.msra.mxu0 0
        %532 = vmatprep.subr.bf16.mxu0 0
        %533 = vmatpush2.bf16.msra.mxu0 0
        %534 = vmatprep.mubr.bf16.mxu0 0
        %535 = vmatmul.mubr.bf16.gmra.mxu0 %v494
        %v536 = vpop.f32.mrf.mxu0
        %v537 = vadd.f32 %v482, %v536
        %v538 = vpop.f32.mrf.mxu0
        %v539 = vadd.f32 %v484, %v538
        %v540 = vpop.f32.mrf.mxu0
        %v541 = vpop.f32.mrf.mxu0
        %542 = vdwg.mxu0
        %vm543 = vmpackc.low %vm411, %vm410
        %v544 = vsel %vm543, 65537, 0
        %545 = vrot.lane.b32.xlu0 %v544, 2
        %v546 = vpop.permute.xlu0 %545
        %v547 = vrot.slane %v546, 4
        %vm548 = vcmask 15360
        %v549 = vsel %vm548, %v547, %v546
        %vm550 = vcmp.ne.s16.totalorder %v549, 0
        %vm551 = vcmp.ne.s16.totalorder %v547, 0
        %v552 = vsel %vm550, %v412, 0
        %v553 = vsel %vm551, %v416, 0
        %s554 = scalar_lea.vmem %s1, 8
        %v555 = vld [vmem:[%s554] sm:$0xf]
        %v558 = vunpack.c.l.b16 %v552
        %v559 = vunpack.c.h.b16 %v552
        %v560 = vunpack.c.l.b16 %v553
        %v561 = vpack.c.b16 %v558, %v558
        %v562 = vpack.c.b16 %v559, %v559
        %v563 = vpack.c.b16 %v560, %v560
        %564 = vrot.lane.b32.xlu0 %v561, 126
        %v565 = vpop.permute.xlu0 %564
        %566 = vrot.lane.b32.xlu0 %v562, 126
        %v567 = vpop.permute.xlu0 %566
        %568 = vrot.lane.b32.xlu0 %v563, 126
        %v569 = vpop.permute.xlu0 %568
        %vm570 = vcmask 1031168
        %v571 = vsel %vm570, %v565, %v567
        %v572 = vsel %vm570, %v567, %v569
        %v574 = vsel %vm436, %v555, 0
        %v577 = vsel %vm440, %v571, 0
        %v580 = vsel %vm440, %v572, 0
        %582 = vmatprep.subr.bf16.mxu0 0
        %583 = vmatpush1.bf16.msra.mxu0 0
        %584 = vmatprep.subr.bf16.mxu0 0
        %585 = vmatpush1.bf16.msra.mxu0 0
        %586 = vmatprep.subr.bf16.mxu0 0
        %587 = vmatpush1.bf16.msra.mxu0 0
        %588 = vmatprep.subr.bf16.mxu0 0
        %589 = vmatpush1.bf16.msra.mxu0 0
        %590 = vmatprep.subr.bf16.mxu0 0
        %591 = vmatpush1.bf16.msra.mxu0 0
        %592 = vmatprep.subr.bf16.mxu0 0
        %593 = vmatpush1.bf16.msra.mxu0 0
        %594 = vmatprep.subr.bf16.mxu0 0
        %595 = vmatpush1.bf16.msra.mxu0 0
        %596 = vmatprep.subr.bf16.mxu0 %v580
        %597 = vmatpush1.bf16.msra.mxu0 %v577
        %598 = vmatprep.subr.bf16.mxu0 0
        %599 = vmatpush2.bf16.msra.mxu0 0
        %600 = vmatprep.subr.bf16.mxu0 0
        %601 = vmatpush2.bf16.msra.mxu0 0
        %602 = vmatprep.subr.bf16.mxu0 0
        %603 = vmatpush2.bf16.msra.mxu0 0
        %604 = vmatprep.subr.bf16.mxu0 0
        %605 = vmatpush2.bf16.msra.mxu0 0
        %606 = vmatprep.subr.bf16.mxu0 0
        %607 = vmatpush2.bf16.msra.mxu0 0
        %608 = vmatprep.subr.bf16.mxu0 0
        %609 = vmatpush2.bf16.msra.mxu0 0
        %610 = vmatprep.subr.bf16.mxu0 0
        %611 = vmatpush2.bf16.msra.mxu0 0
        %612 = vmatprep.subr.bf16.mxu0 0
        %613 = vmatpush2.bf16.msra.mxu0 0
        %614 = vmatprep.mubr.bf16.mxu0 0
        %615 = vmatmul.mubr.bf16.gmra.mxu0 %v574
        %v616 = vpop.f32.mrf.mxu0
        %v617 = vadd.f32 0.0, %v616
        %v618 = vpop.f32.mrf.mxu0
        %v619 = vadd.f32 0.0, %v618
        %v620 = vpop.f32.mrf.mxu0
        %v621 = vpop.f32.mrf.mxu0
        %622 = vdwg.mxu0
        %v623 = vadd.f32 %v537, %v617
        %v624 = vadd.f32 %v539, %v619
        %v625 = vsel %vm413, 65537, 0
        %626 = vrot.lane.b32.xlu0 %v625, 16
        %v627 = vpop.permute.xlu0 %626
        %v628 = vrot.slane %v627, 4
        %vm629 = vcmask 130048
        %v630 = vsel %vm629, %v628, %v627
        %vm631 = vcmp.ne.s16.totalorder %v630, 0
        %vm632 = vcmp.ne.s16.totalorder %v628, 0
        %v633 = vsel %vm631, %v412, 0
        %v634 = vsel %vm632, %v416, 0
        %s635 = scalar_lea.vmem %s1, 12
        %v636 = vld [vmem:[%s635] sm:$0xf]
        %v639 = vunpack.c.l.b16 %v633
        %v640 = vunpack.c.h.b16 %v633
        %v641 = vunpack.c.l.b16 %v634
        %v642 = vpack.c.b16 %v639, %v639
        %v643 = vpack.c.b16 %v640, %v640
        %v644 = vpack.c.b16 %v641, %v641
        %645 = vrot.lane.b32.xlu0 %v642, 112
        %v646 = vpop.permute.xlu0 %645
        %647 = vrot.lane.b32.xlu0 %v643, 112
        %v648 = vpop.permute.xlu0 %647
        %649 = vrot.lane.b32.xlu0 %v644, 112
        %v650 = vpop.permute.xlu0 %649
        %vm651 = vcmask 916480
        %v652 = vsel %vm651, %v646, %v648
        %v653 = vsel %vm651, %v648, %v650
        %v655 = vsel %vm436, %v636, 0
        %v658 = vsel %vm440, %v652, 0
        %v661 = vsel %vm440, %v653, 0
        %663 = vmatprep.subr.bf16.mxu0 0
        %664 = vmatpush1.bf16.msra.mxu0 0
        %665 = vmatprep.subr.bf16.mxu0 0
        %666 = vmatpush1.bf16.msra.mxu0 0
        %667 = vmatprep.subr.bf16.mxu0 0
        %668 = vmatpush1.bf16.msra.mxu0 0
        %669 = vmatprep.subr.bf16.mxu0 0
        %670 = vmatpush1.bf16.msra.mxu0 0
        %671 = vmatprep.subr.bf16.mxu0 0
        %672 = vmatpush1.bf16.msra.mxu0 0
        %673 = vmatprep.subr.bf16.mxu0 0
        %674 = vmatpush1.bf16.msra.mxu0 0
        %675 = vmatprep.subr.bf16.mxu0 0
        %676 = vmatpush1.bf16.msra.mxu0 0
        %677 = vmatprep.subr.bf16.mxu0 %v661
        %678 = vmatpush1.bf16.msra.mxu0 %v658
        %679 = vmatprep.subr.bf16.mxu0 0
        %680 = vmatpush2.bf16.msra.mxu0 0
        %681 = vmatprep.subr.bf16.mxu0 0
        %682 = vmatpush2.bf16.msra.mxu0 0
        %683 = vmatprep.subr.bf16.mxu0 0
        %684 = vmatpush2.bf16.msra.mxu0 0
        %685 = vmatprep.subr.bf16.mxu0 0
        %686 = vmatpush2.bf16.msra.mxu0 0
        %687 = vmatprep.subr.bf16.mxu0 0
        %688 = vmatpush2.bf16.msra.mxu0 0
        %689 = vmatprep.subr.bf16.mxu0 0
        %690 = vmatpush2.bf16.msra.mxu0 0
        %691 = vmatprep.subr.bf16.mxu0 0
        %692 = vmatpush2.bf16.msra.mxu0 0
        %693 = vmatprep.subr.bf16.mxu0 0
        %694 = vmatpush2.bf16.msra.mxu0 0
        %695 = vmatprep.mubr.bf16.mxu0 0
        %696 = vmatmul.mubr.bf16.gmra.mxu0 %v655
        %v697 = vpop.f32.mrf.mxu0
        %v698 = vadd.f32 0.0, %v697
        %v699 = vpop.f32.mrf.mxu0
        %v700 = vadd.f32 0.0, %v699
        %v701 = vpop.f32.mrf.mxu0
        %v702 = vpop.f32.mrf.mxu0
        %703 = vdwg.mxu0
        %v704 = vadd.f32 %v623, %v698
        %v705 = vadd.f32 %v624, %v700
        %s706 = scalar_lea.vmem %s1, 16
        %v707 = vld [vmem:[%s706] sm:$0xf]
        %708 = vrot.lane.b32.xlu0 %v424, 111
        %v709 = vpop.permute.xlu0 %708
        %710 = vrot.lane.b32.xlu0 %v425, 111
        %v711 = vpop.permute.xlu0 %710
        %712 = vrot.lane.b32.xlu0 %v426, 111
        %v713 = vpop.permute.xlu0 %712
        %vm714 = vcmask 908288
        %v715 = vsel %vm714, %v709, %v711
        %v716 = vsel %vm714, %v711, %v713
        %v718 = vsel %vm436, %v707, 0
        %v721 = vsel %vm440, %v715, 0
        %v724 = vsel %vm440, %v716, 0
        %726 = vmatprep.subr.bf16.mxu0 0
        %727 = vmatpush1.bf16.msra.mxu0 0
        %728 = vmatprep.subr.bf16.mxu0 0
        %729 = vmatpush1.bf16.msra.mxu0 0
        %730 = vmatprep.subr.bf16.mxu0 0
        %731 = vmatpush1.bf16.msra.mxu0 0
        %732 = vmatprep.subr.bf16.mxu0 0
        %733 = vmatpush1.bf16.msra.mxu0 0
        %734 = vmatprep.subr.bf16.mxu0 0
        %735 = vmatpush1.bf16.msra.mxu0 0
        %736 = vmatprep.subr.bf16.mxu0 0
        %737 = vmatpush1.bf16.msra.mxu0 0
        %738 = vmatprep.subr.bf16.mxu0 0
        %739 = vmatpush1.bf16.msra.mxu0 0
        %740 = vmatprep.subr.bf16.mxu0 %v724
        %741 = vmatpush1.bf16.msra.mxu0 %v721
        %742 = vmatprep.subr.bf16.mxu0 0
        %743 = vmatpush2.bf16.msra.mxu0 0
        %744 = vmatprep.subr.bf16.mxu0 0
        %745 = vmatpush2.bf16.msra.mxu0 0
        %746 = vmatprep.subr.bf16.mxu0 0
        %747 = vmatpush2.bf16.msra.mxu0 0
        %748 = vmatprep.subr.bf16.mxu0 0
        %749 = vmatpush2.bf16.msra.mxu0 0
        %750 = vmatprep.subr.bf16.mxu0 0
        %751 = vmatpush2.bf16.msra.mxu0 0
        %752 = vmatprep.subr.bf16.mxu0 0
        %753 = vmatpush2.bf16.msra.mxu0 0
        %754 = vmatprep.subr.bf16.mxu0 0
        %755 = vmatpush2.bf16.msra.mxu0 0
        %756 = vmatprep.subr.bf16.mxu0 0
        %757 = vmatpush2.bf16.msra.mxu0 0
        %758 = vmatprep.mubr.bf16.mxu0 0
        %759 = vmatmul.mubr.bf16.gmra.mxu0 %v718
        %v760 = vpop.f32.mrf.mxu0
        %v761 = vadd.f32 0.0, %v760
        %v762 = vpop.f32.mrf.mxu0
        %v763 = vadd.f32 0.0, %v762
        %v764 = vpop.f32.mrf.mxu0
        %v765 = vpop.f32.mrf.mxu0
        %766 = vdwg.mxu0
        %v767 = vadd.f32 %v704, %v761
        %v768 = vadd.f32 %v705, %v763
        %769 = vrot.lane.b32.xlu0 %v544, 18
        %v770 = vpop.permute.xlu0 %769
        %v771 = vrot.slane %v770, 4
        %vm772 = vcmask 146432
        %v773 = vsel %vm772, %v771, %v770
        %vm774 = vcmp.ne.s16.totalorder %v773, 0
        %vm775 = vcmp.ne.s16.totalorder %v771, 0
        %v776 = vsel %vm774, %v412, 0
        %v777 = vsel %vm775, %v416, 0
        %s778 = scalar_lea.vmem %s1, 20
        %v779 = vld [vmem:[%s778] sm:$0xf]
        %v782 = vunpack.c.l.b16 %v776
        %v783 = vunpack.c.h.b16 %v776
        %v784 = vunpack.c.l.b16 %v777
        %v785 = vpack.c.b16 %v782, %v782
        %v786 = vpack.c.b16 %v783, %v783
        %v787 = vpack.c.b16 %v784, %v784
        %788 = vrot.lane.b32.xlu0 %v785, 110
        %v789 = vpop.permute.xlu0 %788
        %790 = vrot.lane.b32.xlu0 %v786, 110
        %v791 = vpop.permute.xlu0 %790
        %792 = vrot.lane.b32.xlu0 %v787, 110
        %v793 = vpop.permute.xlu0 %792
        %vm794 = vcmask 900096
        %v795 = vsel %vm794, %v789, %v791
        %v796 = vsel %vm794, %v791, %v793
        %v798 = vsel %vm436, %v779, 0
        %v801 = vsel %vm440, %v795, 0
        %v804 = vsel %vm440, %v796, 0
        %806 = vmatprep.subr.bf16.mxu0 0
        %807 = vmatpush1.bf16.msra.mxu0 0
        %808 = vmatprep.subr.bf16.mxu0 0
        %809 = vmatpush1.bf16.msra.mxu0 0
        %810 = vmatprep.subr.bf16.mxu0 0
        %811 = vmatpush1.bf16.msra.mxu0 0
        %812 = vmatprep.subr.bf16.mxu0 0
        %813 = vmatpush1.bf16.msra.mxu0 0
        %814 = vmatprep.subr.bf16.mxu0 0
        %815 = vmatpush1.bf16.msra.mxu0 0
        %816 = vmatprep.subr.bf16.mxu0 0
        %817 = vmatpush1.bf16.msra.mxu0 0
        %818 = vmatprep.subr.bf16.mxu0 0
        %819 = vmatpush1.bf16.msra.mxu0 0
        %820 = vmatprep.subr.bf16.mxu0 %v804
        %821 = vmatpush1.bf16.msra.mxu0 %v801
        %822 = vmatprep.subr.bf16.mxu0 0
        %823 = vmatpush2.bf16.msra.mxu0 0
        %824 = vmatprep.subr.bf16.mxu0 0
        %825 = vmatpush2.bf16.msra.mxu0 0
        %826 = vmatprep.subr.bf16.mxu0 0
        %827 = vmatpush2.bf16.msra.mxu0 0
        %828 = vmatprep.subr.bf16.mxu0 0
        %829 = vmatpush2.bf16.msra.mxu0 0
        %830 = vmatprep.subr.bf16.mxu0 0
        %831 = vmatpush2.bf16.msra.mxu0 0
        %832 = vmatprep.subr.bf16.mxu0 0
        %833 = vmatpush2.bf16.msra.mxu0 0
        %834 = vmatprep.subr.bf16.mxu0 0
        %835 = vmatpush2.bf16.msra.mxu0 0
        %836 = vmatprep.subr.bf16.mxu0 0
        %837 = vmatpush2.bf16.msra.mxu0 0
        %838 = vmatprep.mubr.bf16.mxu0 0
        %839 = vmatmul.mubr.bf16.gmra.mxu0 %v798
        %v840 = vpop.f32.mrf.mxu0
        %v841 = vadd.f32 0.0, %v840
        %v842 = vpop.f32.mrf.mxu0
        %v843 = vadd.f32 0.0, %v842
        %v844 = vpop.f32.mrf.mxu0
        %v845 = vpop.f32.mrf.mxu0
        %846 = vdwg.mxu0
        %v847 = vadd.f32 %v767, %v841
        %v848 = vadd.f32 %v768, %v843
        %849 = vrot.lane.b32.xlu0 %v625, 32
        %v850 = vpop.permute.xlu0 %849
        %v851 = vrot.slane %v850, 4
        %vm852 = vcmask 261120
        %v853 = vsel %vm852, %v851, %v850
        %vm854 = vcmp.ne.s16.totalorder %v853, 0
        %vm855 = vcmp.ne.s16.totalorder %v851, 0
        %v856 = vsel %vm854, %v412, 0
        %v857 = vsel %vm855, %v416, 0
        %s858 = scalar_lea.vmem %s1, 24
        %v859 = vld [vmem:[%s858] sm:$0xf]
        %v862 = vunpack.c.l.b16 %v856
        %v863 = vunpack.c.h.b16 %v856
        %v864 = vunpack.c.l.b16 %v857
        %v865 = vpack.c.b16 %v862, %v862
        %v866 = vpack.c.b16 %v863, %v863
        %v867 = vpack.c.b16 %v864, %v864
        %868 = vrot.lane.b32.xlu0 %v865, 96
        %v869 = vpop.permute.xlu0 %868
        %870 = vrot.lane.b32.xlu0 %v866, 96
        %v871 = vpop.permute.xlu0 %870
        %872 = vrot.lane.b32.xlu0 %v867, 96
        %v873 = vpop.permute.xlu0 %872
        %vm874 = vcmask 785408
        %v875 = vsel %vm874, %v869, %v871
        %v876 = vsel %vm874, %v871, %v873
        %v878 = vsel %vm436, %v859, 0
        %v881 = vsel %vm440, %v875, 0
        %v884 = vsel %vm440, %v876, 0
        %886 = vmatprep.subr.bf16.mxu0 0
        %887 = vmatpush1.bf16.msra.mxu0 0
        %888 = vmatprep.subr.bf16.mxu0 0
        %889 = vmatpush1.bf16.msra.mxu0 0
        %890 = vmatprep.subr.bf16.mxu0 0
        %891 = vmatpush1.bf16.msra.mxu0 0
        %892 = vmatprep.subr.bf16.mxu0 0
        %893 = vmatpush1.bf16.msra.mxu0 0
        %894 = vmatprep.subr.bf16.mxu0 0
        %895 = vmatpush1.bf16.msra.mxu0 0
        %896 = vmatprep.subr.bf16.mxu0 0
        %897 = vmatpush1.bf16.msra.mxu0 0
        %898 = vmatprep.subr.bf16.mxu0 0
        %899 = vmatpush1.bf16.msra.mxu0 0
        %900 = vmatprep.subr.bf16.mxu0 %v884
        %901 = vmatpush1.bf16.msra.mxu0 %v881
        %902 = vmatprep.subr.bf16.mxu0 0
        %903 = vmatpush2.bf16.msra.mxu0 0
        %904 = vmatprep.subr.bf16.mxu0 0
        %905 = vmatpush2.bf16.msra.mxu0 0
        %906 = vmatprep.subr.bf16.mxu0 0
        %907 = vmatpush2.bf16.msra.mxu0 0
        %908 = vmatprep.subr.bf16.mxu0 0
        %909 = vmatpush2.bf16.msra.mxu0 0
        %910 = vmatprep.subr.bf16.mxu0 0
        %911 = vmatpush2.bf16.msra.mxu0 0
        %912 = vmatprep.subr.bf16.mxu0 0
        %913 = vmatpush2.bf16.msra.mxu0 0
        %914 = vmatprep.subr.bf16.mxu0 0
        %915 = vmatpush2.bf16.msra.mxu0 0
        %916 = vmatprep.subr.bf16.mxu0 0
        %917 = vmatpush2.bf16.msra.mxu0 0
        %918 = vmatprep.mubr.bf16.mxu0 0
        %919 = vmatmul.mubr.bf16.gmra.mxu0 %v878
        %v920 = vpop.f32.mrf.mxu0
        %v921 = vadd.f32 0.0, %v920
        %v922 = vpop.f32.mrf.mxu0
        %v923 = vadd.f32 0.0, %v922
        %v924 = vpop.f32.mrf.mxu0
        %v925 = vpop.f32.mrf.mxu0
        %926 = vdwg.mxu0
        %v927 = vadd.f32 %v847, %v921
        %v928 = vadd.f32 %v848, %v923
        %s929 = scalar_lea.vmem %s1, 28
        %v930 = vld [vmem:[%s929] sm:$0xf]
        %931 = vrot.lane.b32.xlu0 %v424, 95
        %v932 = vpop.permute.xlu0 %931
        %933 = vrot.lane.b32.xlu0 %v425, 95
        %v934 = vpop.permute.xlu0 %933
        %935 = vrot.lane.b32.xlu0 %v426, 95
        %v936 = vpop.permute.xlu0 %935
        %vm937 = vcmask 777216
        %v938 = vsel %vm937, %v932, %v934
        %v939 = vsel %vm937, %v934, %v936
        %v941 = vsel %vm436, %v930, 0
        %v944 = vsel %vm440, %v938, 0
        %v947 = vsel %vm440, %v939, 0
        %949 = vmatprep.subr.bf16.mxu0 0
        %950 = vmatpush1.bf16.msra.mxu0 0
        %951 = vmatprep.subr.bf16.mxu0 0
        %952 = vmatpush1.bf16.msra.mxu0 0
        %953 = vmatprep.subr.bf16.mxu0 0
        %954 = vmatpush1.bf16.msra.mxu0 0
        %955 = vmatprep.subr.bf16.mxu0 0
        %956 = vmatpush1.bf16.msra.mxu0 0
        %957 = vmatprep.subr.bf16.mxu0 0
        %958 = vmatpush1.bf16.msra.mxu0 0
        %959 = vmatprep.subr.bf16.mxu0 0
        %960 = vmatpush1.bf16.msra.mxu0 0
        %961 = vmatprep.subr.bf16.mxu0 0
        %962 = vmatpush1.bf16.msra.mxu0 0
        %963 = vmatprep.subr.bf16.mxu0 %v947
        %964 = vmatpush1.bf16.msra.mxu0 %v944
        %965 = vmatprep.subr.bf16.mxu0 0
        %966 = vmatpush2.bf16.msra.mxu0 0
        %967 = vmatprep.subr.bf16.mxu0 0
        %968 = vmatpush2.bf16.msra.mxu0 0
        %969 = vmatprep.subr.bf16.mxu0 0
        %970 = vmatpush2.bf16.msra.mxu0 0
        %971 = vmatprep.subr.bf16.mxu0 0
        %972 = vmatpush2.bf16.msra.mxu0 0
        %973 = vmatprep.subr.bf16.mxu0 0
        %974 = vmatpush2.bf16.msra.mxu0 0
        %975 = vmatprep.subr.bf16.mxu0 0
        %976 = vmatpush2.bf16.msra.mxu0 0
        %977 = vmatprep.subr.bf16.mxu0 0
        %978 = vmatpush2.bf16.msra.mxu0 0
        %979 = vmatprep.subr.bf16.mxu0 0
        %980 = vmatpush2.bf16.msra.mxu0 0
        %981 = vmatprep.mubr.bf16.mxu0 0
        %982 = vmatmul.mubr.bf16.gmra.mxu0 %v941
        %v983 = vpop.f32.mrf.mxu0
        %v984 = vadd.f32 0.0, %v983
        %v985 = vpop.f32.mrf.mxu0
        %v986 = vadd.f32 0.0, %v985
        %v987 = vpop.f32.mrf.mxu0
        %v988 = vpop.f32.mrf.mxu0
        %989 = vdwg.mxu0
        %v990 = vadd.f32 %v927, %v984
        %v991 = vadd.f32 %v928, %v986
        %992 = vrot.lane.b32.xlu0 %v544, 34
        %v993 = vpop.permute.xlu0 %992
        %v994 = vrot.slane %v993, 4
        %vm995 = vcmask 277504
        %v996 = vsel %vm995, %v994, %v993
        %vm997 = vcmp.ne.s16.totalorder %v996, 0
        %vm998 = vcmp.ne.s16.totalorder %v994, 0
        %v999 = vsel %vm997, %v412, 0
        %v1000 = vsel %vm998, %v416, 0
        %s1001 = scalar_lea.vmem %s1, 32
        %v1002 = vld [vmem:[%s1001] sm:$0xf]
        %v1005 = vunpack.c.l.b16 %v999
        %v1006 = vunpack.c.h.b16 %v999
        %v1007 = vunpack.c.l.b16 %v1000
        %v1008 = vpack.c.b16 %v1005, %v1005
        %v1009 = vpack.c.b16 %v1006, %v1006
        %v1010 = vpack.c.b16 %v1007, %v1007
        %1011 = vrot.lane.b32.xlu0 %v1008, 94
        %v1012 = vpop.permute.xlu0 %1011
        %1013 = vrot.lane.b32.xlu0 %v1009, 94
        %v1014 = vpop.permute.xlu0 %1013
        %1015 = vrot.lane.b32.xlu0 %v1010, 94
        %v1016 = vpop.permute.xlu0 %1015
        %vm1017 = vcmask 769024
        %v1018 = vsel %vm1017, %v1012, %v1014
        %v1019 = vsel %vm1017, %v1014, %v1016
        %v1021 = vsel %vm436, %v1002, 0
        %v1024 = vsel %vm440, %v1018, 0
        %v1027 = vsel %vm440, %v1019, 0
        %1029 = vmatprep.subr.bf16.mxu0 0
        %1030 = vmatpush1.bf16.msra.mxu0 0
        %1031 = vmatprep.subr.bf16.mxu0 0
        %1032 = vmatpush1.bf16.msra.mxu0 0
        %1033 = vmatprep.subr.bf16.mxu0 0
        %1034 = vmatpush1.bf16.msra.mxu0 0
        %1035 = vmatprep.subr.bf16.mxu0 0
        %1036 = vmatpush1.bf16.msra.mxu0 0
        %1037 = vmatprep.subr.bf16.mxu0 0
        %1038 = vmatpush1.bf16.msra.mxu0 0
        %1039 = vmatprep.subr.bf16.mxu0 0
        %1040 = vmatpush1.bf16.msra.mxu0 0
        %1041 = vmatprep.subr.bf16.mxu0 0
        %1042 = vmatpush1.bf16.msra.mxu0 0
        %1043 = vmatprep.subr.bf16.mxu0 %v1027
        %1044 = vmatpush1.bf16.msra.mxu0 %v1024
        %1045 = vmatprep.subr.bf16.mxu0 0
        %1046 = vmatpush2.bf16.msra.mxu0 0
        %1047 = vmatprep.subr.bf16.mxu0 0
        %1048 = vmatpush2.bf16.msra.mxu0 0
        %1049 = vmatprep.subr.bf16.mxu0 0
        %1050 = vmatpush2.bf16.msra.mxu0 0
        %1051 = vmatprep.subr.bf16.mxu0 0
        %1052 = vmatpush2.bf16.msra.mxu0 0
        %1053 = vmatprep.subr.bf16.mxu0 0
        %1054 = vmatpush2.bf16.msra.mxu0 0
        %1055 = vmatprep.subr.bf16.mxu0 0
        %1056 = vmatpush2.bf16.msra.mxu0 0
        %1057 = vmatprep.subr.bf16.mxu0 0
        %1058 = vmatpush2.bf16.msra.mxu0 0
        %1059 = vmatprep.subr.bf16.mxu0 0
        %1060 = vmatpush2.bf16.msra.mxu0 0
        %1061 = vmatprep.mubr.bf16.mxu0 0
        %1062 = vmatmul.mubr.bf16.gmra.mxu0 %v1021
        %v1063 = vpop.f32.mrf.mxu0
        %v1064 = vadd.f32 0.0, %v1063
        %v1065 = vpop.f32.mrf.mxu0
        %v1066 = vadd.f32 0.0, %v1065
        %v1067 = vpop.f32.mrf.mxu0
        %v1068 = vpop.f32.mrf.mxu0
        %1069 = vdwg.mxu0
        %v1070 = vadd.f32 %v990, %v1064
        %v1071 = vadd.f32 %v991, %v1066
        %1073 = vset.pattern.permute.xlu0 0
        %1074 = vperm.xlu0 %1073, %v379
        %v1075 = vpop.permute.xlu0 %1074
        %v1077 = vmul.f32 %v1070, %v1075
        %v1078 = vmul.f32 %v1071, %v1075
        %1080 = vset.pattern.permute.xlu0 0
        %1081 = vperm.xlu0 %1080, %v380
        %v1082 = vpop.permute.xlu0 %1081
        %v1084 = vadd.f32 %v1077, %v1082
        %v1085 = vadd.f32 %v1078, %v1082
        %v1086 = vmax.f32 %v1084, 0.0
        %v1087 = vmax.f32 %v1085, 0.0
        %1088 = vst.msk [vmem:[#allocation3] sm:$0xf] %vm362, 0
        %1089 = vst.msk [vmem:[#allocation3 + $0x8] sm:$0xf] %vm364, 0
        %v1090 = vpack.c.bf16 %v1086, %v1086
        %v1091 = vpack.c.bf16 %v1087, %v1087
        %v1094 = vunpack.c.l.b16 %v1090
        %v1095 = vunpack.c.l.b16 %v1091
        %v1096 = vpack.c.b16 %v1095, %v1094
        %1097 = vrot.lane.b32.xlu0 %v1096, 17
        %v1098 = vpop.permute.xlu0 %1097
        %v1099 = vrot.slane %v1098, 4
        %v1100 = vsel %vm370, %v1099, %v1098
        %1103 = vst.msk [vmem:[#allocation3] sm:$0xff] %vm376, %v1100
        %1104 = vst.msk [vmem:[#allocation3 + $0x8] sm:$0xf] %vm362, %v1099
        %v1105 = vld [vmem:[%s5] sm:$0xff]
        %v1106 = vld [vmem:[%s6] sm:$0xff]
        %v1107 = vld [vmem:[#allocation3] sm:$0xff]
        %v1108 = vsel %vm413, %v1107, 0
        %v1109 = vld [vmem:[%s4] sm:$0xf]
        %v1110 = vld [vmem:[#allocation3 + $0x8] sm:$0xf]
        %s1111 = scalar_lea.vmem %s4, 4
        %v1112 = vld [vmem:[%s1111] sm:$0xf]
        %v1115 = vunpack.c.l.b16 %v1107
        %v1116 = vunpack.c.h.b16 %v1107
        %v1117 = vunpack.c.l.b16 %v1110
        %v1118 = vpack.c.b16 %v1115, %v1115
        %v1119 = vpack.c.b16 %v1116, %v1116
        %v1120 = vpack.c.b16 %v1117, %v1117
        %1121 = vrot.lane.b32.xlu0 %v1118, 127
        %v1122 = vpop.permute.xlu0 %1121
        %1123 = vrot.lane.b32.xlu0 %v1119, 127
        %v1124 = vpop.permute.xlu0 %1123
        %1125 = vrot.lane.b32.xlu0 %v1120, 127
        %v1126 = vpop.permute.xlu0 %1125
        %v1127 = vsel %vm433, %v1122, %v1124
        %v1128 = vsel %vm433, %v1124, %v1126
        %v1130 = vsel %vm436, %v1112, 0
        %v1133 = vsel %vm440, %v1127, 0
        %v1136 = vsel %vm440, %v1128, 0
        %1138 = vmatprep.subr.bf16.mxu0 0
        %1139 = vmatpush1.bf16.msra.mxu0 0
        %1140 = vmatprep.subr.bf16.mxu0 0
        %1141 = vmatpush1.bf16.msra.mxu0 0
        %1142 = vmatprep.subr.bf16.mxu0 0
        %1143 = vmatpush1.bf16.msra.mxu0 0
        %1144 = vmatprep.subr.bf16.mxu0 0
        %1145 = vmatpush1.bf16.msra.mxu0 0
        %1146 = vmatprep.subr.bf16.mxu0 0
        %1147 = vmatpush1.bf16.msra.mxu0 0
        %1148 = vmatprep.subr.bf16.mxu0 0
        %1149 = vmatpush1.bf16.msra.mxu0 0
        %1150 = vmatprep.subr.bf16.mxu0 0
        %1151 = vmatpush1.bf16.msra.mxu0 0
        %1152 = vmatprep.subr.bf16.mxu0 %v1136
        %1153 = vmatpush1.bf16.msra.mxu0 %v1133
        %1154 = vmatprep.subr.bf16.mxu0 0
        %1155 = vmatpush2.bf16.msra.mxu0 0
        %1156 = vmatprep.subr.bf16.mxu0 0
        %1157 = vmatpush2.bf16.msra.mxu0 0
        %1158 = vmatprep.subr.bf16.mxu0 0
        %1159 = vmatpush2.bf16.msra.mxu0 0
        %1160 = vmatprep.subr.bf16.mxu0 0
        %1161 = vmatpush2.bf16.msra.mxu0 0
        %1162 = vmatprep.subr.bf16.mxu0 0
        %1163 = vmatpush2.bf16.msra.mxu0 0
        %1164 = vmatprep.subr.bf16.mxu0 0
        %1165 = vmatpush2.bf16.msra.mxu0 0
        %1166 = vmatprep.subr.bf16.mxu0 0
        %1167 = vmatpush2.bf16.msra.mxu0 0
        %1168 = vmatprep.subr.bf16.mxu0 0
        %1169 = vmatpush2.bf16.msra.mxu0 0
        %1170 = vmatprep.mubr.bf16.mxu0 0
        %1171 = vmatmul.mubr.bf16.gmra.mxu0 %v1130
        %v1172 = vpop.f32.mrf.mxu0
        %v1173 = vadd.f32 0.0, %v1172
        %v1174 = vpop.f32.mrf.mxu0
        %v1175 = vadd.f32 0.0, %v1174
        %v1176 = vpop.f32.mrf.mxu0
        %v1177 = vpop.f32.mrf.mxu0
        %1178 = vdwg.mxu0
        %v1180 = vunpack.c.l.b16 %v1108
        %v1181 = vunpack.c.h.b16 %v1108
        %v1182 = vpack.c.b16 %v1180, %v1180
        %v1183 = vpack.c.b16 %v1181, %v1181
        %v1185 = vsel %vm436, %v1109, 0
        %v1188 = vsel %vm440, %v1182, 0
        %v1191 = vsel %vm440, %v1183, 0
        %1193 = vmatprep.subr.bf16.mxu0 0
        %1194 = vmatpush1.bf16.msra.mxu0 0
        %1195 = vmatprep.subr.bf16.mxu0 0
        %1196 = vmatpush1.bf16.msra.mxu0 0
        %1197 = vmatprep.subr.bf16.mxu0 0
        %1198 = vmatpush1.bf16.msra.mxu0 0
        %1199 = vmatprep.subr.bf16.mxu0 0
        %1200 = vmatpush1.bf16.msra.mxu0 0
        %1201 = vmatprep.subr.bf16.mxu0 0
        %1202 = vmatpush1.bf16.msra.mxu0 0
        %1203 = vmatprep.subr.bf16.mxu0 0
        %1204 = vmatpush1.bf16.msra.mxu0 0
        %1205 = vmatprep.subr.bf16.mxu0 0
        %1206 = vmatpush1.bf16.msra.mxu0 0
        %1207 = vmatprep.subr.bf16.mxu0 %v1191
        %1208 = vmatpush1.bf16.msra.mxu0 %v1188
        %1209 = vmatprep.subr.bf16.mxu0 0
        %1210 = vmatpush2.bf16.msra.mxu0 0
        %1211 = vmatprep.subr.bf16.mxu0 0
        %1212 = vmatpush2.bf16.msra.mxu0 0
        %1213 = vmatprep.subr.bf16.mxu0 0
        %1214 = vmatpush2.bf16.msra.mxu0 0
        %1215 = vmatprep.subr.bf16.mxu0 0
        %1216 = vmatpush2.bf16.msra.mxu0 0
        %1217 = vmatprep.subr.bf16.mxu0 0
        %1218 = vmatpush2.bf16.msra.mxu0 0
        %1219 = vmatprep.subr.bf16.mxu0 0
        %1220 = vmatpush2.bf16.msra.mxu0 0
        %1221 = vmatprep.subr.bf16.mxu0 0
        %1222 = vmatpush2.bf16.msra.mxu0 0
        %1223 = vmatprep.subr.bf16.mxu0 0
        %1224 = vmatpush2.bf16.msra.mxu0 0
        %1225 = vmatprep.mubr.bf16.mxu0 0
        %1226 = vmatmul.mubr.bf16.gmra.mxu0 %v1185
        %v1227 = vpop.f32.mrf.mxu0
        %v1228 = vadd.f32 %v1173, %v1227
        %v1229 = vpop.f32.mrf.mxu0
        %v1230 = vadd.f32 %v1175, %v1229
        %v1231 = vpop.f32.mrf.mxu0
        %v1232 = vpop.f32.mrf.mxu0
        %1233 = vdwg.mxu0
        %v1234 = vsel %vm550, %v1107, 0
        %v1235 = vsel %vm551, %v1110, 0
        %s1236 = scalar_lea.vmem %s4, 8
        %v1237 = vld [vmem:[%s1236] sm:$0xf]
        %v1240 = vunpack.c.l.b16 %v1234
        %v1241 = vunpack.c.h.b16 %v1234
        %v1242 = vunpack.c.l.b16 %v1235
        %v1243 = vpack.c.b16 %v1240, %v1240
        %v1244 = vpack.c.b16 %v1241, %v1241
        %v1245 = vpack.c.b16 %v1242, %v1242
        %1246 = vrot.lane.b32.xlu0 %v1243, 126
        %v1247 = vpop.permute.xlu0 %1246
        %1248 = vrot.lane.b32.xlu0 %v1244, 126
        %v1249 = vpop.permute.xlu0 %1248
        %1250 = vrot.lane.b32.xlu0 %v1245, 126
        %v1251 = vpop.permute.xlu0 %1250
        %v1252 = vsel %vm570, %v1247, %v1249
        %v1253 = vsel %vm570, %v1249, %v1251
        %v1255 = vsel %vm436, %v1237, 0
        %v1258 = vsel %vm440, %v1252, 0
        %v1261 = vsel %vm440, %v1253, 0
        %1263 = vmatprep.subr.bf16.mxu0 0
        %1264 = vmatpush1.bf16.msra.mxu0 0
        %1265 = vmatprep.subr.bf16.mxu0 0
        %1266 = vmatpush1.bf16.msra.mxu0 0
        %1267 = vmatprep.subr.bf16.mxu0 0
        %1268 = vmatpush1.bf16.msra.mxu0 0
        %1269 = vmatprep.subr.bf16.mxu0 0
        %1270 = vmatpush1.bf16.msra.mxu0 0
        %1271 = vmatprep.subr.bf16.mxu0 0
        %1272 = vmatpush1.bf16.msra.mxu0 0
        %1273 = vmatprep.subr.bf16.mxu0 0
        %1274 = vmatpush1.bf16.msra.mxu0 0
        %1275 = vmatprep.subr.bf16.mxu0 0
        %1276 = vmatpush1.bf16.msra.mxu0 0
        %1277 = vmatprep.subr.bf16.mxu0 %v1261
        %1278 = vmatpush1.bf16.msra.mxu0 %v1258
        %1279 = vmatprep.subr.bf16.mxu0 0
        %1280 = vmatpush2.bf16.msra.mxu0 0
        %1281 = vmatprep.subr.bf16.mxu0 0
        %1282 = vmatpush2.bf16.msra.mxu0 0
        %1283 = vmatprep.subr.bf16.mxu0 0
        %1284 = vmatpush2.bf16.msra.mxu0 0
        %1285 = vmatprep.subr.bf16.mxu0 0
        %1286 = vmatpush2.bf16.msra.mxu0 0
        %1287 = vmatprep.subr.bf16.mxu0 0
        %1288 = vmatpush2.bf16.msra.mxu0 0
        %1289 = vmatprep.subr.bf16.mxu0 0
        %1290 = vmatpush2.bf16.msra.mxu0 0
        %1291 = vmatprep.subr.bf16.mxu0 0
        %1292 = vmatpush2.bf16.msra.mxu0 0
        %1293 = vmatprep.subr.bf16.mxu0 0
        %1294 = vmatpush2.bf16.msra.mxu0 0
        %1295 = vmatprep.mubr.bf16.mxu0 0
        %1296 = vmatmul.mubr.bf16.gmra.mxu0 %v1255
        %v1297 = vpop.f32.mrf.mxu0
        %v1298 = vadd.f32 0.0, %v1297
        %v1299 = vpop.f32.mrf.mxu0
        %v1300 = vadd.f32 0.0, %v1299
        %v1301 = vpop.f32.mrf.mxu0
        %v1302 = vpop.f32.mrf.mxu0
        %1303 = vdwg.mxu0
        %v1304 = vadd.f32 %v1228, %v1298
        %v1305 = vadd.f32 %v1230, %v1300
        %v1306 = vsel %vm631, %v1107, 0
        %v1307 = vsel %vm632, %v1110, 0
        %s1308 = scalar_lea.vmem %s4, 12
        %v1309 = vld [vmem:[%s1308] sm:$0xf]
        %v1312 = vunpack.c.l.b16 %v1306
        %v1313 = vunpack.c.h.b16 %v1306
        %v1314 = vunpack.c.l.b16 %v1307
        %v1315 = vpack.c.b16 %v1312, %v1312
        %v1316 = vpack.c.b16 %v1313, %v1313
        %v1317 = vpack.c.b16 %v1314, %v1314
        %1318 = vrot.lane.b32.xlu0 %v1315, 112
        %v1319 = vpop.permute.xlu0 %1318
        %1320 = vrot.lane.b32.xlu0 %v1316, 112
        %v1321 = vpop.permute.xlu0 %1320
        %1322 = vrot.lane.b32.xlu0 %v1317, 112
        %v1323 = vpop.permute.xlu0 %1322
        %v1324 = vsel %vm651, %v1319, %v1321
        %v1325 = vsel %vm651, %v1321, %v1323
        %v1327 = vsel %vm436, %v1309, 0
        %v1330 = vsel %vm440, %v1324, 0
        %v1333 = vsel %vm440, %v1325, 0
        %1335 = vmatprep.subr.bf16.mxu0 0
        %1336 = vmatpush1.bf16.msra.mxu0 0
        %1337 = vmatprep.subr.bf16.mxu0 0
        %1338 = vmatpush1.bf16.msra.mxu0 0
        %1339 = vmatprep.subr.bf16.mxu0 0
        %1340 = vmatpush1.bf16.msra.mxu0 0
        %1341 = vmatprep.subr.bf16.mxu0 0
        %1342 = vmatpush1.bf16.msra.mxu0 0
        %1343 = vmatprep.subr.bf16.mxu0 0
        %1344 = vmatpush1.bf16.msra.mxu0 0
        %1345 = vmatprep.subr.bf16.mxu0 0
        %1346 = vmatpush1.bf16.msra.mxu0 0
        %1347 = vmatprep.subr.bf16.mxu0 0
        %1348 = vmatpush1.bf16.msra.mxu0 0
        %1349 = vmatprep.subr.bf16.mxu0 %v1333
        %1350 = vmatpush1.bf16.msra.mxu0 %v1330
        %1351 = vmatprep.subr.bf16.mxu0 0
        %1352 = vmatpush2.bf16.msra.mxu0 0
        %1353 = vmatprep.subr.bf16.mxu0 0
        %1354 = vmatpush2.bf16.msra.mxu0 0
        %1355 = vmatprep.subr.bf16.mxu0 0
        %1356 = vmatpush2.bf16.msra.mxu0 0
        %1357 = vmatprep.subr.bf16.mxu0 0
        %1358 = vmatpush2.bf16.msra.mxu0 0
        %1359 = vmatprep.subr.bf16.mxu0 0
        %1360 = vmatpush2.bf16.msra.mxu0 0
        %1361 = vmatprep.subr.bf16.mxu0 0
        %1362 = vmatpush2.bf16.msra.mxu0 0
        %1363 = vmatprep.subr.bf16.mxu0 0
        %1364 = vmatpush2.bf16.msra.mxu0 0
        %1365 = vmatprep.subr.bf16.mxu0 0
        %1366 = vmatpush2.bf16.msra.mxu0 0
        %1367 = vmatprep.mubr.bf16.mxu0 0
        %1368 = vmatmul.mubr.bf16.gmra.mxu0 %v1327
        %v1369 = vpop.f32.mrf.mxu0
        %v1370 = vadd.f32 0.0, %v1369
        %v1371 = vpop.f32.mrf.mxu0
        %v1372 = vadd.f32 0.0, %v1371
        %v1373 = vpop.f32.mrf.mxu0
        %v1374 = vpop.f32.mrf.mxu0
        %1375 = vdwg.mxu0
        %v1376 = vadd.f32 %v1304, %v1370
        %v1377 = vadd.f32 %v1305, %v1372
        %s1378 = scalar_lea.vmem %s4, 16
        %v1379 = vld [vmem:[%s1378] sm:$0xf]
        %1380 = vrot.lane.b32.xlu0 %v1118, 111
        %v1381 = vpop.permute.xlu0 %1380
        %1382 = vrot.lane.b32.xlu0 %v1119, 111
        %v1383 = vpop.permute.xlu0 %1382
        %1384 = vrot.lane.b32.xlu0 %v1120, 111
        %v1385 = vpop.permute.xlu0 %1384
        %v1386 = vsel %vm714, %v1381, %v1383
        %v1387 = vsel %vm714, %v1383, %v1385
        %v1389 = vsel %vm436, %v1379, 0
        %v1392 = vsel %vm440, %v1386, 0
        %v1395 = vsel %vm440, %v1387, 0
        %1397 = vmatprep.subr.bf16.mxu0 0
        %1398 = vmatpush1.bf16.msra.mxu0 0
        %1399 = vmatprep.subr.bf16.mxu0 0
        %1400 = vmatpush1.bf16.msra.mxu0 0
        %1401 = vmatprep.subr.bf16.mxu0 0
        %1402 = vmatpush1.bf16.msra.mxu0 0
        %1403 = vmatprep.subr.bf16.mxu0 0
        %1404 = vmatpush1.bf16.msra.mxu0 0
        %1405 = vmatprep.subr.bf16.mxu0 0
        %1406 = vmatpush1.bf16.msra.mxu0 0
        %1407 = vmatprep.subr.bf16.mxu0 0
        %1408 = vmatpush1.bf16.msra.mxu0 0
        %1409 = vmatprep.subr.bf16.mxu0 0
        %1410 = vmatpush1.bf16.msra.mxu0 0
        %1411 = vmatprep.subr.bf16.mxu0 %v1395
        %1412 = vmatpush1.bf16.msra.mxu0 %v1392
        %1413 = vmatprep.subr.bf16.mxu0 0
        %1414 = vmatpush2.bf16.msra.mxu0 0
        %1415 = vmatprep.subr.bf16.mxu0 0
        %1416 = vmatpush2.bf16.msra.mxu0 0
        %1417 = vmatprep.subr.bf16.mxu0 0
        %1418 = vmatpush2.bf16.msra.mxu0 0
        %1419 = vmatprep.subr.bf16.mxu0 0
        %1420 = vmatpush2.bf16.msra.mxu0 0
        %1421 = vmatprep.subr.bf16.mxu0 0
        %1422 = vmatpush2.bf16.msra.mxu0 0
        %1423 = vmatprep.subr.bf16.mxu0 0
        %1424 = vmatpush2.bf16.msra.mxu0 0
        %1425 = vmatprep.subr.bf16.mxu0 0
        %1426 = vmatpush2.bf16.msra.mxu0 0
        %1427 = vmatprep.subr.bf16.mxu0 0
        %1428 = vmatpush2.bf16.msra.mxu0 0
        %1429 = vmatprep.mubr.bf16.mxu0 0
        %1430 = vmatmul.mubr.bf16.gmra.mxu0 %v1389
        %v1431 = vpop.f32.mrf.mxu0
        %v1432 = vadd.f32 0.0, %v1431
        %v1433 = vpop.f32.mrf.mxu0
        %v1434 = vadd.f32 0.0, %v1433
        %v1435 = vpop.f32.mrf.mxu0
        %v1436 = vpop.f32.mrf.mxu0
        %1437 = vdwg.mxu0
        %v1438 = vadd.f32 %v1376, %v1432
        %v1439 = vadd.f32 %v1377, %v1434
        %v1440 = vsel %vm774, %v1107, 0
        %v1441 = vsel %vm775, %v1110, 0
        %s1442 = scalar_lea.vmem %s4, 20
        %v1443 = vld [vmem:[%s1442] sm:$0xf]
        %v1446 = vunpack.c.l.b16 %v1440
        %v1447 = vunpack.c.h.b16 %v1440
        %v1448 = vunpack.c.l.b16 %v1441
        %v1449 = vpack.c.b16 %v1446, %v1446
        %v1450 = vpack.c.b16 %v1447, %v1447
        %v1451 = vpack.c.b16 %v1448, %v1448
        %1452 = vrot.lane.b32.xlu0 %v1449, 110
        %v1453 = vpop.permute.xlu0 %1452
        %1454 = vrot.lane.b32.xlu0 %v1450, 110
        %v1455 = vpop.permute.xlu0 %1454
        %1456 = vrot.lane.b32.xlu0 %v1451, 110
        %v1457 = vpop.permute.xlu0 %1456
        %v1458 = vsel %vm794, %v1453, %v1455
        %v1459 = vsel %vm794, %v1455, %v1457
        %v1461 = vsel %vm436, %v1443, 0
        %v1464 = vsel %vm440, %v1458, 0
        %v1467 = vsel %vm440, %v1459, 0
        %1469 = vmatprep.subr.bf16.mxu0 0
        %1470 = vmatpush1.bf16.msra.mxu0 0
        %1471 = vmatprep.subr.bf16.mxu0 0
        %1472 = vmatpush1.bf16.msra.mxu0 0
        %1473 = vmatprep.subr.bf16.mxu0 0
        %1474 = vmatpush1.bf16.msra.mxu0 0
        %1475 = vmatprep.subr.bf16.mxu0 0
        %1476 = vmatpush1.bf16.msra.mxu0 0
        %1477 = vmatprep.subr.bf16.mxu0 0
        %1478 = vmatpush1.bf16.msra.mxu0 0
        %1479 = vmatprep.subr.bf16.mxu0 0
        %1480 = vmatpush1.bf16.msra.mxu0 0
        %1481 = vmatprep.subr.bf16.mxu0 0
        %1482 = vmatpush1.bf16.msra.mxu0 0
        %1483 = vmatprep.subr.bf16.mxu0 %v1467
        %1484 = vmatpush1.bf16.msra.mxu0 %v1464
        %1485 = vmatprep.subr.bf16.mxu0 0
        %1486 = vmatpush2.bf16.msra.mxu0 0
        %1487 = vmatprep.subr.bf16.mxu0 0
        %1488 = vmatpush2.bf16.msra.mxu0 0
        %1489 = vmatprep.subr.bf16.mxu0 0
        %1490 = vmatpush2.bf16.msra.mxu0 0
        %1491 = vmatprep.subr.bf16.mxu0 0
        %1492 = vmatpush2.bf16.msra.mxu0 0
        %1493 = vmatprep.subr.bf16.mxu0 0
        %1494 = vmatpush2.bf16.msra.mxu0 0
        %1495 = vmatprep.subr.bf16.mxu0 0
        %1496 = vmatpush2.bf16.msra.mxu0 0
        %1497 = vmatprep.subr.bf16.mxu0 0
        %1498 = vmatpush2.bf16.msra.mxu0 0
        %1499 = vmatprep.subr.bf16.mxu0 0
        %1500 = vmatpush2.bf16.msra.mxu0 0
        %1501 = vmatprep.mubr.bf16.mxu0 0
        %1502 = vmatmul.mubr.bf16.gmra.mxu0 %v1461
        %v1503 = vpop.f32.mrf.mxu0
        %v1504 = vadd.f32 0.0, %v1503
        %v1505 = vpop.f32.mrf.mxu0
        %v1506 = vadd.f32 0.0, %v1505
        %v1507 = vpop.f32.mrf.mxu0
        %v1508 = vpop.f32.mrf.mxu0
        %1509 = vdwg.mxu0
        %v1510 = vadd.f32 %v1438, %v1504
        %v1511 = vadd.f32 %v1439, %v1506
        %v1512 = vsel %vm854, %v1107, 0
        %v1513 = vsel %vm855, %v1110, 0
        %s1514 = scalar_lea.vmem %s4, 24
        %v1515 = vld [vmem:[%s1514] sm:$0xf]
        %v1518 = vunpack.c.l.b16 %v1512
        %v1519 = vunpack.c.h.b16 %v1512
        %v1520 = vunpack.c.l.b16 %v1513
        %v1521 = vpack.c.b16 %v1518, %v1518
        %v1522 = vpack.c.b16 %v1519, %v1519
        %v1523 = vpack.c.b16 %v1520, %v1520
        %1524 = vrot.lane.b32.xlu0 %v1521, 96
        %v1525 = vpop.permute.xlu0 %1524
        %1526 = vrot.lane.b32.xlu0 %v1522, 96
        %v1527 = vpop.permute.xlu0 %1526
        %1528 = vrot.lane.b32.xlu0 %v1523, 96
        %v1529 = vpop.permute.xlu0 %1528
        %v1530 = vsel %vm874, %v1525, %v1527
        %v1531 = vsel %vm874, %v1527, %v1529
        %v1533 = vsel %vm436, %v1515, 0
        %v1536 = vsel %vm440, %v1530, 0
        %v1539 = vsel %vm440, %v1531, 0
        %1541 = vmatprep.subr.bf16.mxu0 0
        %1542 = vmatpush1.bf16.msra.mxu0 0
        %1543 = vmatprep.subr.bf16.mxu0 0
        %1544 = vmatpush1.bf16.msra.mxu0 0
        %1545 = vmatprep.subr.bf16.mxu0 0
        %1546 = vmatpush1.bf16.msra.mxu0 0
        %1547 = vmatprep.subr.bf16.mxu0 0
        %1548 = vmatpush1.bf16.msra.mxu0 0
        %1549 = vmatprep.subr.bf16.mxu0 0
        %1550 = vmatpush1.bf16.msra.mxu0 0
        %1551 = vmatprep.subr.bf16.mxu0 0
        %1552 = vmatpush1.bf16.msra.mxu0 0
        %1553 = vmatprep.subr.bf16.mxu0 0
        %1554 = vmatpush1.bf16.msra.mxu0 0
        %1555 = vmatprep.subr.bf16.mxu0 %v1539
        %1556 = vmatpush1.bf16.msra.mxu0 %v1536
        %1557 = vmatprep.subr.bf16.mxu0 0
        %1558 = vmatpush2.bf16.msra.mxu0 0
        %1559 = vmatprep.subr.bf16.mxu0 0
        %1560 = vmatpush2.bf16.msra.mxu0 0
        %1561 = vmatprep.subr.bf16.mxu0 0
        %1562 = vmatpush2.bf16.msra.mxu0 0
        %1563 = vmatprep.subr.bf16.mxu0 0
        %1564 = vmatpush2.bf16.msra.mxu0 0
        %1565 = vmatprep.subr.bf16.mxu0 0
        %1566 = vmatpush2.bf16.msra.mxu0 0
        %1567 = vmatprep.subr.bf16.mxu0 0
        %1568 = vmatpush2.bf16.msra.mxu0 0
        %1569 = vmatprep.subr.bf16.mxu0 0
        %1570 = vmatpush2.bf16.msra.mxu0 0
        %1571 = vmatprep.subr.bf16.mxu0 0
        %1572 = vmatpush2.bf16.msra.mxu0 0
        %1573 = vmatprep.mubr.bf16.mxu0 0
        %1574 = vmatmul.mubr.bf16.gmra.mxu0 %v1533
        %v1575 = vpop.f32.mrf.mxu0
        %v1576 = vadd.f32 0.0, %v1575
        %v1577 = vpop.f32.mrf.mxu0
        %v1578 = vadd.f32 0.0, %v1577
        %v1579 = vpop.f32.mrf.mxu0
        %v1580 = vpop.f32.mrf.mxu0
        %1581 = vdwg.mxu0
        %v1582 = vadd.f32 %v1510, %v1576
        %v1583 = vadd.f32 %v1511, %v1578
        %s1584 = scalar_lea.vmem %s4, 28
        %v1585 = vld [vmem:[%s1584] sm:$0xf]
        %1586 = vrot.lane.b32.xlu0 %v1118, 95
        %v1587 = vpop.permute.xlu0 %1586
        %1588 = vrot.lane.b32.xlu0 %v1119, 95
        %v1589 = vpop.permute.xlu0 %1588
        %1590 = vrot.lane.b32.xlu0 %v1120, 95
        %v1591 = vpop.permute.xlu0 %1590
        %v1592 = vsel %vm937, %v1587, %v1589
        %v1593 = vsel %vm937, %v1589, %v1591
        %v1595 = vsel %vm436, %v1585, 0
        %v1598 = vsel %vm440, %v1592, 0
        %v1601 = vsel %vm440, %v1593, 0
        %1603 = vmatprep.subr.bf16.mxu0 0
        %1604 = vmatpush1.bf16.msra.mxu0 0
        %1605 = vmatprep.subr.bf16.mxu0 0
        %1606 = vmatpush1.bf16.msra.mxu0 0
        %1607 = vmatprep.subr.bf16.mxu0 0
        %1608 = vmatpush1.bf16.msra.mxu0 0
        %1609 = vmatprep.subr.bf16.mxu0 0
        %1610 = vmatpush1.bf16.msra.mxu0 0
        %1611 = vmatprep.subr.bf16.mxu0 0
        %1612 = vmatpush1.bf16.msra.mxu0 0
        %1613 = vmatprep.subr.bf16.mxu0 0
        %1614 = vmatpush1.bf16.msra.mxu0 0
        %1615 = vmatprep.subr.bf16.mxu0 0
        %1616 = vmatpush1.bf16.msra.mxu0 0
        %1617 = vmatprep.subr.bf16.mxu0 %v1601
        %1618 = vmatpush1.bf16.msra.mxu0 %v1598
        %1619 = vmatprep.subr.bf16.mxu0 0
        %1620 = vmatpush2.bf16.msra.mxu0 0
        %1621 = vmatprep.subr.bf16.mxu0 0
        %1622 = vmatpush2.bf16.msra.mxu0 0
        %1623 = vmatprep.subr.bf16.mxu0 0
        %1624 = vmatpush2.bf16.msra.mxu0 0
        %1625 = vmatprep.subr.bf16.mxu0 0
        %1626 = vmatpush2.bf16.msra.mxu0 0
        %1627 = vmatprep.subr.bf16.mxu0 0
        %1628 = vmatpush2.bf16.msra.mxu0 0
        %1629 = vmatprep.subr.bf16.mxu0 0
        %1630 = vmatpush2.bf16.msra.mxu0 0
        %1631 = vmatprep.subr.bf16.mxu0 0
        %1632 = vmatpush2.bf16.msra.mxu0 0
        %1633 = vmatprep.subr.bf16.mxu0 0
        %1634 = vmatpush2.bf16.msra.mxu0 0
        %1635 = vmatprep.mubr.bf16.mxu0 0
        %1636 = vmatmul.mubr.bf16.gmra.mxu0 %v1595
        %v1637 = vpop.f32.mrf.mxu0
        %v1638 = vadd.f32 0.0, %v1637
        %v1639 = vpop.f32.mrf.mxu0
        %v1640 = vadd.f32 0.0, %v1639
        %v1641 = vpop.f32.mrf.mxu0
        %v1642 = vpop.f32.mrf.mxu0
        %1643 = vdwg.mxu0
        %v1644 = vadd.f32 %v1582, %v1638
        %v1645 = vadd.f32 %v1583, %v1640
        %v1646 = vsel %vm997, %v1107, 0
        %v1647 = vsel %vm998, %v1110, 0
        %s1648 = scalar_lea.vmem %s4, 32
        %v1649 = vld [vmem:[%s1648] sm:$0xf]
        %v1652 = vunpack.c.l.b16 %v1646
        %v1653 = vunpack.c.h.b16 %v1646
        %v1654 = vunpack.c.l.b16 %v1647
        %v1655 = vpack.c.b16 %v1652, %v1652
        %v1656 = vpack.c.b16 %v1653, %v1653
        %v1657 = vpack.c.b16 %v1654, %v1654
        %1658 = vrot.lane.b32.xlu0 %v1655, 94
        %v1659 = vpop.permute.xlu0 %1658
        %1660 = vrot.lane.b32.xlu0 %v1656, 94
        %v1661 = vpop.permute.xlu0 %1660
        %1662 = vrot.lane.b32.xlu0 %v1657, 94
        %v1663 = vpop.permute.xlu0 %1662
        %v1664 = vsel %vm1017, %v1659, %v1661
        %v1665 = vsel %vm1017, %v1661, %v1663
        %v1667 = vsel %vm436, %v1649, 0
        %v1670 = vsel %vm440, %v1664, 0
        %v1673 = vsel %vm440, %v1665, 0
        %1675 = vmatprep.subr.bf16.mxu0 0
        %1676 = vmatpush1.bf16.msra.mxu0 0
        %1677 = vmatprep.subr.bf16.mxu0 0
        %1678 = vmatpush1.bf16.msra.mxu0 0
        %1679 = vmatprep.subr.bf16.mxu0 0
        %1680 = vmatpush1.bf16.msra.mxu0 0
        %1681 = vmatprep.subr.bf16.mxu0 0
        %1682 = vmatpush1.bf16.msra.mxu0 0
        %1683 = vmatprep.subr.bf16.mxu0 0
        %1684 = vmatpush1.bf16.msra.mxu0 0
        %1685 = vmatprep.subr.bf16.mxu0 0
        %1686 = vmatpush1.bf16.msra.mxu0 0
        %1687 = vmatprep.subr.bf16.mxu0 0
        %1688 = vmatpush1.bf16.msra.mxu0 0
        %1689 = vmatprep.subr.bf16.mxu0 %v1673
        %1690 = vmatpush1.bf16.msra.mxu0 %v1670
        %1691 = vmatprep.subr.bf16.mxu0 0
        %1692 = vmatpush2.bf16.msra.mxu0 0
        %1693 = vmatprep.subr.bf16.mxu0 0
        %1694 = vmatpush2.bf16.msra.mxu0 0
        %1695 = vmatprep.subr.bf16.mxu0 0
        %1696 = vmatpush2.bf16.msra.mxu0 0
        %1697 = vmatprep.subr.bf16.mxu0 0
        %1698 = vmatpush2.bf16.msra.mxu0 0
        %1699 = vmatprep.subr.bf16.mxu0 0
        %1700 = vmatpush2.bf16.msra.mxu0 0
        %1701 = vmatprep.subr.bf16.mxu0 0
        %1702 = vmatpush2.bf16.msra.mxu0 0
        %1703 = vmatprep.subr.bf16.mxu0 0
        %1704 = vmatpush2.bf16.msra.mxu0 0
        %1705 = vmatprep.subr.bf16.mxu0 0
        %1706 = vmatpush2.bf16.msra.mxu0 0
        %1707 = vmatprep.mubr.bf16.mxu0 0
        %1708 = vmatmul.mubr.bf16.gmra.mxu0 %v1667
        %v1709 = vpop.f32.mrf.mxu0
        %v1710 = vadd.f32 0.0, %v1709
        %v1711 = vpop.f32.mrf.mxu0
        %v1712 = vadd.f32 0.0, %v1711
        %v1713 = vpop.f32.mrf.mxu0
        %v1714 = vpop.f32.mrf.mxu0
        %1715 = vdwg.mxu0
        %v1716 = vadd.f32 %v1644, %v1710
        %v1717 = vadd.f32 %v1645, %v1712
        %1719 = vset.pattern.permute.xlu0 0
        %1720 = vperm.xlu0 %1719, %v1105
        %v1721 = vpop.permute.xlu0 %1720
        %v1723 = vmul.f32 %v1716, %v1721
        %v1724 = vmul.f32 %v1717, %v1721
        %1726 = vset.pattern.permute.xlu0 0
        %1727 = vperm.xlu0 %1726, %v1106
        %v1728 = vpop.permute.xlu0 %1727
        %v1730 = vadd.f32 %v1723, %v1728
        %v1731 = vadd.f32 %v1724, %v1728
        %v1732 = vld [vmem:[%s7] sm:$0xf]
        %v1733 = vunpack.c.l.b16 %v361
        %v1734 = vunpack.c.h.b16 %v361
        %v1735 = vpack.c.b16 %v1733, %v1733
        %v1736 = vpack.c.b16 %v1734, %v1734
        %v1738 = vsel %vm436, %v1732, 0
        %v1741 = vsel %vm440, %v1735, 0
        %v1744 = vsel %vm440, %v1736, 0
        %1746 = vmatprep.subr.bf16.mxu0 0
        %1747 = vmatpush1.bf16.msra.mxu0 0
        %1748 = vmatprep.subr.bf16.mxu0 0
        %1749 = vmatpush1.bf16.msra.mxu0 0
        %1750 = vmatprep.subr.bf16.mxu0 0
        %1751 = vmatpush1.bf16.msra.mxu0 0
        %1752 = vmatprep.subr.bf16.mxu0 0
        %1753 = vmatpush1.bf16.msra.mxu0 0
        %1754 = vmatprep.subr.bf16.mxu0 0
        %1755 = vmatpush1.bf16.msra.mxu0 0
        %1756 = vmatprep.subr.bf16.mxu0 0
        %1757 = vmatpush1.bf16.msra.mxu0 0
        %1758 = vmatprep.subr.bf16.mxu0 0
        %1759 = vmatpush1.bf16.msra.mxu0 0
        %1760 = vmatprep.subr.bf16.mxu0 %v1744
        %1761 = vmatpush1.bf16.msra.mxu0 %v1741
        %1762 = vmatprep.subr.bf16.mxu0 0
        %1763 = vmatpush2.bf16.msra.mxu0 0
        %1764 = vmatprep.subr.bf16.mxu0 0
        %1765 = vmatpush2.bf16.msra.mxu0 0
        %1766 = vmatprep.subr.bf16.mxu0 0
        %1767 = vmatpush2.bf16.msra.mxu0 0
        %1768 = vmatprep.subr.bf16.mxu0 0
        %1769 = vmatpush2.bf16.msra.mxu0 0
        %1770 = vmatprep.subr.bf16.mxu0 0
        %1771 = vmatpush2.bf16.msra.mxu0 0
        %1772 = vmatprep.subr.bf16.mxu0 0
        %1773 = vmatpush2.bf16.msra.mxu0 0
        %1774 = vmatprep.subr.bf16.mxu0 0
        %1775 = vmatpush2.bf16.msra.mxu0 0
        %1776 = vmatprep.subr.bf16.mxu0 0
        %1777 = vmatpush2.bf16.msra.mxu0 0
        %1778 = vmatprep.mubr.bf16.mxu0 0
        %1779 = vmatmul.mubr.bf16.gmra.mxu0 %v1738
        %v1780 = vpop.f32.mrf.mxu0
        %v1781 = vadd.f32 0.0, %v1780
        %v1782 = vpop.f32.mrf.mxu0
        %v1783 = vadd.f32 0.0, %v1782
        %v1784 = vpop.f32.mrf.mxu0
        %v1785 = vpop.f32.mrf.mxu0
        %1786 = vdwg.mxu0
        %v1787 = vld [vmem:[%s8] sm:$0xff]
        %1789 = vset.pattern.permute.xlu0 0
        %1790 = vperm.xlu0 %1789, %v1787
        %v1791 = vpop.permute.xlu0 %1790
        %v1793 = vmul.f32 %v1781, %v1791
        %v1794 = vmul.f32 %v1783, %v1791
        %v1795 = vld [vmem:[%s9] sm:$0xff]
        %1797 = vset.pattern.permute.xlu0 0
        %1798 = vperm.xlu0 %1797, %v1795
        %v1799 = vpop.permute.xlu0 %1798
        %v1801 = vadd.f32 %v1793, %v1799
        %v1802 = vadd.f32 %v1794, %v1799
        %v1803 = vadd.f32 %v1730, %v1801
        %v1804 = vadd.f32 %v1731, %v1802
        %v1805 = vmax.f32 %v1803, 0.0
        %v1806 = vmax.f32 %v1804, 0.0
        %v1807 = vpack.c.bf16 %v1805, %v1805
        %v1808 = vpack.c.bf16 %v1806, %v1806
        %v1811 = vunpack.c.l.b16 %v1807
        %v1812 = vunpack.c.l.b16 %v1808
        %v1813 = vpack.c.b16 %v1812, %v1811
        %1815 = vst [vmem:[%s352] sm:$0xff] %v1813
        %s1816 = sand.u32 %s247, 1
        %s1817 = scalar_lea.sflag [#allocation5], %s1816
        %s1818 = sand.u32 %s247, 1
        %s1819 = smul.addr %s1818, 8
        %s1820 = scalar_lea.vmem [#allocation4], %s1819
        // Predicated region
        $region61: #{tpu_custom_call.1} parent=59 // pred_check
          %p1821 = pneg %p257
        $region62: #{tpu_custom_call.1} parent=59 // pred_check_branch
          %1823 = sbr.rel (%p1821) target = $region64
        $region63: #{tpu_custom_call.1} parent=59 // pred_region
          %s1825 = ssub.s32 128, 128
          %1826 = vsyncadd %s1817, %s1825
          %s1827 = smul.addr %s24, 2
          %s1828 = smul.addr %s1827, 64
          %s1829 = scalar_lea.hbm %s10, %s1828
          %s1831 = sshll.u32 %s1820, 4
          %s1832 = int_to_ptr.vmem [resolvable:$true] %s1831
          %1834 = dma.vmem_to_hbm [thread:$0]  %s1832, 128, %s1829, %s1817
        $region64: #{tpu_custom_call.1} parent=59 // pred_fallthru
          _
      $region60: #{tpu_custom_call.1} parent=5 // pred_fallthru
        _
      %p1835 = scmp.le.s32.totalorder 2, %s19
      // Predicated region
      $region65: #{tpu_custom_call.1} parent=5 // pred_check
        %p1836 = pneg %p1835
      $region66: #{tpu_custom_call.1} parent=5 // pred_check_branch
        %1838 = sbr.rel (%p1836) target = $region68
      $region67: #{tpu_custom_call.1} parent=5 // pred_region
        %s1839 = ssub.s32 %s19, 2
        // Predicated region
        $region69: #{tpu_custom_call.1} parent=67 // pred_check
          %p1840 = pneg %p263
        $region70: #{tpu_custom_call.1} parent=67 // pred_check_branch
          %1842 = sbr.rel (%p1840) target = $region72
        $region71: #{tpu_custom_call.1} parent=67 // pred_region
          %s1843 = sand.u32 %s248, 1
          %s1844 = scalar_lea.sflag [#allocation5], %s1843
          %s1845 = sand.u32 %s248, 1
          %s1846 = smul.addr %s1845, 8
          %s1847 = scalar_lea.vmem [#allocation4], %s1846
          %1848 = dma.done %s1844, 128
        $region72: #{tpu_custom_call.1} parent=67 // pred_fallthru
          _
      $region68: #{tpu_custom_call.1} parent=5 // pred_fallthru
        _
    $region6: #{tpu_custom_call.1} parent=1 // loop_footer
      %s23 = sadd.s32 1, %s19
    $region7: #{tpu_custom_call.1} parent=1 // loop_footer_branch
      %18 = sbr.rel target = $region3
    $region8: #{tpu_custom_call.1} parent=1 // loop_exit
      _
    %1849 = vsyncpa [#allocation5], 1
    %s1850 = scalar_lea.sflag [#allocation5], 1
    %1851 = vsyncpa %s1850, 1

</llo_original>
